<compile_context>
chip_gen: v6e
topology: v6e:2x2x1
jax: 0.10.0
libtpu: 0.0.40
codegen_flags: <defaults>
</compile_context>

<pallas_src>
import functools

import jax
import jax.numpy as jnp
from jax import lax
from jax.experimental import pallas as pl
from jax.experimental.pallas import tpu as pltpu

EPS = 1e-5
GROUPS = 32
MXU_DTYPE = jnp.bfloat16      # matmul operand dtype (accumulation is always f32)
STORE_DTYPE = jnp.bfloat16    # dtype of intermediates round-tripped through HBM


# --------------------------------------------------------------------------------------
# small helpers
# --------------------------------------------------------------------------------------
def _silu(x):
    # x * sigmoid(x) == 0.5 * x * (1 + tanh(x/2)): one EUP op per element.
    return 0.5 * x * (1.0 + jnp.tanh(0.5 * x))


def _apply_gn_silu(y, mean_c, rstd_c, gamma, beta):
    t = (y.astype(jnp.float32) - mean_c) * rstd_c * gamma + beta
    return _silu(t)


def _gn_finalize(ch_sum, ch_sq, m, mt, count):
    """(1, C) mean / rstd from per-channel sums via the (C,G)/(G,C) one-hots (MXU)."""
    g_sum = jnp.dot(ch_sum, m, preferred_element_type=jnp.float32)
    g_sq = jnp.dot(ch_sq, m, preferred_element_type=jnp.float32)
    mean_g = g_sum / count
    var_g = jnp.maximum(g_sq / count - mean_g * mean_g, 0.0)   # clamp E[x^2]-mean^2 >= 0
    rstd_g = lax.rsqrt(var_g + EPS)
    mean_c = jnp.dot(mean_g, mt, preferred_element_type=jnp.float32)
    rstd_c = jnp.dot(rstd_g, mt, preferred_element_type=jnp.float32)
    return mean_c, rstd_c


def _conv3x3_rows(ext_bf, w2_ref, w, n_out):
    """3x3 conv (padding=1) on a channel-last flattened image slab.

    ext_bf : ((n_out + 2*w), C) bf16 conv input with one halo image-row above and below
             (halo rows must already be zero where they fall outside the image).
    w2_ref : (9, C, C) ref, tap index = (dh+1)*3 + (dw+1).
    Returns (n_out, C) f32.

    Only two pltpu.roll's (one per horizontal tap) on the bf16 slab; vertical taps are
    static slices of the halo'd buffer; the horizontal edge mask is applied AFTER the
    matmul, once per dw-group of three taps.
    """
    n_ext = ext_bf.shape[0]
    cout = w2_ref.shape[2]
    col = lax.broadcasted_iota(jnp.int32, (n_out, 1), 0) % w
    acc = jnp.zeros((n_out, cout), jnp.float32)
    # TODO(synk): when Cout % 128 == 0, stack the 3 vertical taps of each dw into one
    # (C, 3*Cout) matmul to fill the 256-wide MXU (lane-slicing the stacked result is
    # only free at 128-lane-aligned offsets, so it is not a win for small Cout).
    for dw in (-1, 0, 1):
        src = ext_bf if dw == 0 else pltpu.roll(ext_bf, shift=(-dw) % n_ext, axis=0)
        part = jnp.zeros((n_out, cout), jnp.float32)
        for dh in (-1, 0, 1):
            tap = (dh + 1) * 3 + (dw + 1)
            part = part + jnp.dot(src[(dh + 1) * w:(dh + 1) * w + n_out, :], w2_ref[tap],
                                  preferred_element_type=jnp.float32)
        if dw == 0:
            acc = acc + part
        else:
            ok = (col + dw >= 0) & (col + dw < w)     # zero the horizontally wrapped taps
            acc = acc + jnp.where(ok, part, 0.0)
    return acc


def _group_onehot(c, groups):
    """(C, G) one-hot channel->group matrix and its transpose (used on the MXU)."""
    cpg = c // groups
    gid = jnp.arange(c) // cpg
    m = (gid[:, None] == jnp.arange(groups)[None, :]).astype(jnp.float32)
    return m, m.T


def _vmem_capacity_bytes():
    """Physical VMEM per TensorCore (128 MiB v5e/v6e, 64 MiB v7x); safe fallback."""
    try:
        cap = int(pltpu.get_tpu_info().vmem_capacity_bytes)
    except Exception:
        cap = 64 * 1024 * 1024
    if not (32 * 1024 * 1024) <= cap <= (1 << 31):
        cap = 64 * 1024 * 1024
    return cap


def _pick_tile_rows(hw, row_bytes, cap_bytes):
    """Largest divisor of hw (multiple of 16, or hw itself) whose block fits cap_bytes.

    Tiles are sized by bytes, not a fixed row count: tiny tiles are dominated by the
    ~0.35 us fixed per-grid-step overhead.
    """
    divs = [d for d in range(16, hw, 16) if hw % d == 0] + [hw]
    fitting = [d for d in divs if d * row_bytes <= cap_bytes]
    return max(fitting) if fitting else min(divs)


def _pick_tile_h(h, w, cout, budget_bytes):
    """Largest divisor of h (image rows per stage-2 tile) whose working set fits budget."""
    per_row = w * cout * 44 + 1                 # rough live bytes per image row (pass A)
    fixed = 9 * cout * cout * 4                 # double-buffered bf16 3x3 weights
    divs = [d for d in range(1, h + 1) if h % d == 0 and (d * w) % 16 == 0]
    if not divs:
        return None
    fitting = [d for d in divs if d * per_row + fixed <= budget_bytes]
    return max(fitting) if fitting else min(divs)


# --------------------------------------------------------------------------------------
# stage 1, pass A: 1x1 conv (matmul) + per-sample GroupNorm-1 statistics
# --------------------------------------------------------------------------------------
def _s1_conv_stats_kernel(x_ref, w_ref, m_ref, mt_ref, y_ref, stats_ref, *,
                          hw_total, groups):
    j = pl.program_id(1)

    @pl.when(j == 0)
    def _init():
        stats_ref[...] = jnp.zeros_like(stats_ref)

    x = x_ref[0]                                                      # (R, Cin) bf16
    y = jnp.dot(x, w_ref[...], preferred_element_type=jnp.float32)   # (R, C)  f32
    # bf16 HBM round-trip of the intermediate; GN stats below stay f32 (stats come from
    # the f32 values, downstream normalizes the bf16 copy -> tiny documented mismatch).
    y_ref[0] = y.astype(y_ref.dtype)

    r, c = y.shape
    ones = jnp.ones((1, r), jnp.float32)
    # channel moments on the MXU (idle after the conv) instead of an XLU sublane reduce;
    # accumulate via two sublane-slice adds (no (8, C) concat per step).
    stats_ref[0, 0:1, :] += jnp.dot(ones, y, preferred_element_type=jnp.float32)
    stats_ref[0, 1:2, :] += jnp.dot(ones, y * y, preferred_element_type=jnp.float32)

    @pl.when(j == pl.num_programs(1) - 1)
    def _finalize():
        count = float(hw_total * (c // groups))
        mean_c, rstd_c = _gn_finalize(stats_ref[0, 0:1, :], stats_ref[0, 1:2, :],
                                      m_ref[...], mt_ref[...], count)
        stats_ref[0, 0:1, :] = mean_c
        stats_ref[0, 1:2, :] = rstd_c


def _s1_conv_stats_call(x2d, w1, m, mt, tile_rows, groups, vmem_limit):
    n, hw, cin = x2d.shape
    cout = w1.shape[1]
    g = m.shape[1]
    t = hw // tile_rows
    kern = functools.partial(_s1_conv_stats_kernel, hw_total=hw, groups=groups)
    return pl.pallas_call(
        kern,
        out_shape=(jax.ShapeDtypeStruct((n, hw, cout), STORE_DTYPE),
                   jax.ShapeDtypeStruct((n, 8, cout), jnp.float32)),
        grid_spec=pltpu.PrefetchScalarGridSpec(
            num_scalar_prefetch=0,
            grid=(n, t),
            in_specs=[
                pl.BlockSpec((1, tile_rows, cin), lambda i, j: (i, j, 0)),
                pl.BlockSpec((cin, cout), lambda i, j: (0, 0)),
                pl.BlockSpec((cout, g), lambda i, j: (0, 0)),
                pl.BlockSpec((g, cout), lambda i, j: (0, 0)),
            ],
            out_specs=[
                pl.BlockSpec((1, tile_rows, cout), lambda i, j: (i, j, 0)),
                pl.BlockSpec((1, 8, cout), lambda i, j: (i, 0, 0)),   # resident accumulator
            ],
        ),
        compiler_params=pltpu.CompilerParams(
            dimension_semantics=("parallel", "arbitrary"),
            vmem_limit_bytes=vmem_limit),
    )(x2d, w1, m, mt)


# --------------------------------------------------------------------------------------
# stage 1, pass B: normalize + affine + SiLU (only used when stage2 is disabled)
# --------------------------------------------------------------------------------------
def _s1_norm_kernel(y_ref, stats_ref, gamma_ref, beta_ref, o_ref):
    out1 = _apply_gn_silu(y_ref[0], stats_ref[0, 0:1, :], stats_ref[0, 1:2, :],
                          gamma_ref[...], beta_ref[...])
    o_ref[0] = out1.astype(o_ref.dtype)


def _s1_norm_call(y, stats, gamma, beta, tile_rows, vmem_limit):
    n, hw, cout = y.shape
    t = hw // tile_rows
    return pl.pallas_call(
        _s1_norm_kernel,
        out_shape=jax.ShapeDtypeStruct((n, hw, cout), jnp.float32),
        grid_spec=pltpu.PrefetchScalarGridSpec(
            num_scalar_prefetch=0,
            grid=(n, t),
            in_specs=[
                pl.BlockSpec((1, tile_rows, cout), lambda i, j: (i, j, 0)),
                pl.BlockSpec((1, 8, cout), lambda i, j: (i, 0, 0)),
                pl.BlockSpec((1, cout), lambda i, j: (0, 0)),
                pl.BlockSpec((1, cout), lambda i, j: (0, 0)),
            ],
            out_specs=pl.BlockSpec((1, tile_rows, cout), lambda i, j: (i, j, 0)),
        ),
        compiler_params=pltpu.CompilerParams(
            dimension_semantics=("parallel", "parallel"),
            vmem_limit_bytes=vmem_limit),
    )(y, stats, gamma, beta)


# --------------------------------------------------------------------------------------
# stage 2, FUSED variant: whole (H*W, C) slab per sample resident in VMEM
#   GN1+SiLU (recomputed in VMEM) -> in-kernel 3x3 conv -> GN2 + SiLU -> residual -> SiLU
# --------------------------------------------------------------------------------------
def _s2_fused_kernel(y_ref, stats1_ref, g1_ref, b1_ref, w2_ref, g2_ref, b2_ref,
                     m_ref, mt_ref, o_ref, *, h, w, groups):
    hw = h * w
    out1 = _apply_gn_silu(y_ref[0], stats1_ref[0, 0:1, :], stats1_ref[0, 1:2, :],
                          g1_ref[...], b1_ref[...])                     # (HW, C) f32
    c = out1.shape[1]

    # conv input: ONE bf16 cast, plus one zero image-row of padding above and below
    zrow = jnp.zeros((w, c), MXU_DTYPE)
    ext = jnp.concatenate([zrow, out1.astype(MXU_DTYPE), zrow], axis=0)
    acc = _conv3x3_rows(ext, w2_ref, w, hw)                             # (HW, C) f32

    # GroupNorm(32) over the conv output: whole sample resident -> single pass
    ones = jnp.ones((1, hw), jnp.float32)
    ch_sum = jnp.dot(ones, acc, preferred_element_type=jnp.float32)
    ch_sq = jnp.dot(ones, acc * acc, preferred_element_type=jnp.float32)
    count = float(hw * (c // groups))
    mean2, rstd2 = _gn_finalize(ch_sum, ch_sq, m_ref[...], mt_ref[...], count)

    t2 = (acc - mean2) * rstd2 * g2_ref[...] + b2_ref[...]
    out = out1 + _silu(t2)                                              # out += stage2(out)
    o_ref[0] = _silu(out).astype(o_ref.dtype)                           # final SiLU


def _s2_fused_call(y, stats1, gamma1, beta1, w2taps, gamma2, beta2, m, mt,
                   h, w, groups, vmem_limit):
    n, hw, cout = y.shape
    g = m.shape[1]
    kern = functools.partial(_s2_fused_kernel, h=h, w=w, groups=groups)
    return pl.pallas_call(
        kern,
        out_shape=jax.ShapeDtypeStruct((n, hw, cout), jnp.float32),
        grid_spec=pltpu.PrefetchScalarGridSpec(
            num_scalar_prefetch=0,
            grid=(n,),
            in_specs=[
                pl.BlockSpec((1, hw, cout), lambda i: (i, 0, 0)),
                pl.BlockSpec((1, 8, cout), lambda i: (i, 0, 0)),
                pl.BlockSpec((1, cout), lambda i: (0, 0)),
                pl.BlockSpec((1, cout), lambda i: (0, 0)),
                pl.BlockSpec((9, cout, cout), lambda i: (0, 0, 0)),
                pl.BlockSpec((1, cout), lambda i: (0, 0)),
                pl.BlockSpec((1, cout), lambda i: (0, 0)),
                pl.BlockSpec((cout, g), lambda i: (0, 0)),
                pl.BlockSpec((g, cout), lambda i: (0, 0)),
            ],
            out_specs=pl.BlockSpec((1, hw, cout), lambda i: (i, 0, 0)),
        ),
        compiler_params=pltpu.CompilerParams(
            dimension_semantics=("parallel",),
            vmem_limit_bytes=vmem_limit),
    )(y, stats1, gamma1, beta1, w2taps, gamma2, beta2, m, mt)


# --------------------------------------------------------------------------------------
# stage 2, TILED variant (pass A): row-tiled 3x3 conv with +-1 image-row halo, two-phase
# GroupNorm-2 (partial channel sums accumulated across the "arbitrary" tile axis)
# --------------------------------------------------------------------------------------
def _s2_conv_stats_kernel(y_c_ref, y_t_ref, y_b_ref, stats1_ref, g1_ref, b1_ref,
                          w2_ref, m_ref, mt_ref, conv_ref, stats2_ref, *,
                          h, w, tile_h, groups):
    j = pl.program_id(1)
    n_tiles = pl.num_programs(1)

    @pl.when(j == 0)
    def _init():
        stats2_ref[...] = jnp.zeros_like(stats2_ref)

    mean1 = stats1_ref[0, 0:1, :]
    rstd1 = stats1_ref[0, 1:2, :]
    g1 = g1_ref[...]
    b1 = b1_ref[...]

    n_out = tile_h * w
    # GN1+SiLU recomputed in VMEM (out1 never round-trips HBM), tile + its halo rows
    out1_c = _apply_gn_silu(y_c_ref[0], mean1, rstd1, g1, b1)        # (tile_h*W, C)
    out1_t = _apply_gn_silu(y_t_ref[0], mean1, rstd1, g1, b1)        # (W, C) row above
    out1_b = _apply_gn_silu(y_b_ref[0], mean1, rstd1, g1, b1)        # (W, C) row below

    # halo rows that fall outside the image are the conv's zero padding
    top_ok = (j > 0).astype(jnp.float32)
    bot_ok = (j < n_tiles - 1).astype(jnp.float32)
    ext = jnp.concatenate([(out1_t * top_ok).astype(MXU_DTYPE),
                           out1_c.astype(MXU_DTYPE),
                           (out1_b * bot_ok).astype(MXU_DTYPE)], axis=0)

    acc = _conv3x3_rows(ext, w2_ref, w, n_out)                        # (tile_h*W, C) f32
    conv_ref[0] = acc.astype(conv_ref.dtype)                          # bf16 round-trip

    ones = jnp.ones((1, n_out), jnp.float32)
    stats2_ref[0, 0:1, :] += jnp.dot(ones, acc, preferred_element_type=jnp.float32)
    stats2_ref[0, 1:2, :] += jnp.dot(ones, acc * acc, preferred_element_type=jnp.float32)

    @pl.when(j == n_tiles - 1)
    def _finalize():
        c = acc.shape[1]
        count = float(h * w * (c // groups))
        mean2, rstd2 = _gn_finalize(stats2_ref[0, 0:1, :], stats2_ref[0, 1:2, :],
                                    m_ref[...], mt_ref[...], count)
        stats2_ref[0, 0:1, :] = mean2
        stats2_ref[0, 1:2, :] = rstd2


def _s2_conv_stats_call(y, stats1, gamma1, beta1, w2taps, m, mt, h, w, tile_h,
                        groups, vmem_limit):
    n, hw, cout = y.shape
    g = m.shape[1]
    n_tiles = h // tile_h
    rows = tile_h * w
    kern = functools.partial(_s2_conv_stats_kernel, h=h, w=w, tile_h=tile_h, groups=groups)
    return pl.pallas_call(
        kern,
        out_shape=(jax.ShapeDtypeStruct((n, hw, cout), STORE_DTYPE),     # conv2 output
                   jax.ShapeDtypeStruct((n, 8, cout), jnp.float32)),     # GN2 stats
        grid_spec=pltpu.PrefetchScalarGridSpec(
            num_scalar_prefetch=0,
            grid=(n, n_tiles),
            in_specs=[
                pl.BlockSpec((1, rows, cout), lambda i, j: (i, j, 0)),
                # +-1 image-row halos (block unit = one image row of W pixels); edge tiles
                # read a clamped duplicate row that is zero-masked inside the kernel
                pl.BlockSpec((1, w, cout),
                             lambda i, j: (i, jnp.maximum(j * tile_h - 1, 0), 0)),
                pl.BlockSpec((1, w, cout),
                             lambda i, j: (i, jnp.minimum((j + 1) * tile_h, h - 1), 0)),
                pl.BlockSpec((1, 8, cout), lambda i, j: (i, 0, 0)),
                pl.BlockSpec((1, cout), lambda i, j: (0, 0)),
                pl.BlockSpec((1, cout), lambda i, j: (0, 0)),
                pl.BlockSpec((9, cout, cout), lambda i, j: (0, 0, 0)),
                pl.BlockSpec((cout, g), lambda i, j: (0, 0)),
                pl.BlockSpec((g, cout), lambda i, j: (0, 0)),
            ],
            out_specs=[
                pl.BlockSpec((1, rows, cout), lambda i, j: (i, j, 0)),
                pl.BlockSpec((1, 8, cout), lambda i, j: (i, 0, 0)),   # resident accumulator
            ],
        ),
        compiler_params=pltpu.CompilerParams(
            dimension_semantics=("parallel", "arbitrary"),
            vmem_limit_bytes=vmem_limit),
    )(y, y, y, stats1, gamma1, beta1, w2taps, m, mt)


# --------------------------------------------------------------------------------------
# stage 2, TILED variant (pass B): GN2 normalize + SiLU + residual + final SiLU
# --------------------------------------------------------------------------------------
def _s2_norm_kernel(y_ref, conv_ref, stats1_ref, stats2_ref,
                    g1_ref, b1_ref, g2_ref, b2_ref, o_ref):
    out1 = _apply_gn_silu(y_ref[0], stats1_ref[0, 0:1, :], stats1_ref[0, 1:2, :],
                          g1_ref[...], b1_ref[...])
    t2 = (conv_ref[0].astype(jnp.float32) - stats2_ref[0, 0:1, :]) * stats2_ref[0, 1:2, :] \
        * g2_ref[...] + b2_ref[...]
    out = out1 + _silu(t2)
    o_ref[0] = _silu(out).astype(o_ref.dtype)


def _s2_norm_call(y, conv2, stats1, stats2, gamma1, beta1, gamma2, beta2, rows, vmem_limit):
    n, hw, cout = y.shape
    t = hw // rows
    return pl.pallas_call(
        _s2_norm_kernel,
        out_shape=jax.ShapeDtypeStruct((n, hw, cout), jnp.float32),
        grid_spec=pltpu.PrefetchScalarGridSpec(
            num_scalar_prefetch=0,
            grid=(n, t),
            in_specs=[
                pl.BlockSpec((1, rows, cout), lambda i, j: (i, j, 0)),
                pl.BlockSpec((1, rows, cout), lambda i, j: (i, j, 0)),
                pl.BlockSpec((1, 8, cout), lambda i, j: (i, 0, 0)),
                pl.BlockSpec((1, 8, cout), lambda i, j: (i, 0, 0)),
                pl.BlockSpec((1, cout), lambda i, j: (0, 0)),
                pl.BlockSpec((1, cout), lambda i, j: (0, 0)),
                pl.BlockSpec((1, cout), lambda i, j: (0, 0)),
                pl.BlockSpec((1, cout), lambda i, j: (0, 0)),
            ],
            out_specs=pl.BlockSpec((1, rows, cout), lambda i, j: (i, j, 0)),
        ),
        compiler_params=pltpu.CompilerParams(
            dimension_semantics=("parallel", "parallel"),
            vmem_limit_bytes=vmem_limit),
    )(y, conv2, stats1, stats2, gamma1, beta1, gamma2, beta2)


# --------------------------------------------------------------------------------------
# public forward
# --------------------------------------------------------------------------------------
def fuse_block_forward(x, w1, gamma1, beta1, w2=None, gamma2=None, beta2=None, *,
                       stage2=False, groups=GROUPS, channels_last=False,
                       stage2_mode="auto", stage2_tile_h=None, stage1_tile_rows=None):
    """FuseBlock forward.

    x: (N, Cin, H, W) f32 (or (N, H, W, Cin) if channels_last=True, which removes the
    two HBM transpose passes).  Returns the same layout with Cout channels.
    """
    if channels_last:
        n, h, w, cin = x.shape
        x2d = jnp.reshape(x, (n, h * w, cin)).astype(MXU_DTYPE)
    else:
        n, cin, h, w = x.shape
        x2d = jnp.transpose(x, (0, 2, 3, 1)).reshape(n, h * w, cin).astype(MXU_DTYPE)
    cout = w1.shape[1]
    assert cout % groups == 0, "GroupNorm(32) requires out_dim % 32 == 0"
    hw = h * w

    cap = _vmem_capacity_bytes()
    vlim2 = int(cap * 0.8)                         # stage-2 calls
    vlim1 = min(vlim2, 64 * 1024 * 1024)           # stage-1 calls (small blocks)

    if stage1_tile_rows is None:
        row_bytes = 2 * (cin + cout) + 8 * cout    # bf16 in/out + f32 temporaries per row
        tile_rows = _pick_tile_rows(hw, row_bytes, cap_bytes=4 * 1024 * 1024)
    else:
        tile_rows = stage1_tile_rows
        assert hw % tile_rows == 0 and (tile_rows % 16 == 0 or tile_rows == hw)

    w1c = jnp.asarray(w1).astype(MXU_DTYPE)
    gamma1 = jnp.asarray(gamma1, jnp.float32).reshape(1, cout)
    beta1 = jnp.asarray(beta1, jnp.float32).reshape(1, cout)
    m, mt = _group_onehot(cout, groups)

    y, stats1 = _s1_conv_stats_call(x2d, w1c, m, mt, tile_rows, groups, vlim1)

    if not stage2:
        out2d = _s1_norm_call(y, stats1, gamma1, beta1, tile_rows, vlim1)
    else:
        assert w2 is not None and gamma2 is not None and beta2 is not None
        w2taps = jnp.asarray(w2, jnp.float32).reshape(9, cout, cout).astype(MXU_DTYPE)
        gamma2 = jnp.asarray(gamma2, jnp.float32).reshape(1, cout)
        beta2 = jnp.asarray(beta2, jnp.float32).reshape(1, cout)

        mode = stage2_mode
        if mode not in ("auto", "fused", "tiled"):
            raise ValueError(f"unknown stage2_mode {mode!r}")
        tile_h = stage2_tile_h
        if mode == "auto":
            fused_bytes = hw * cout * 40 + 9 * cout * cout * 4   # rough live-set estimate
            mode = "fused" if fused_bytes <= int(cap * 0.55) else "tiled"
        if mode == "tiled":
            if tile_h is None:
                tile_h = _pick_tile_h(h, w, cout, budget_bytes=int(cap * 0.45))
            ok = (tile_h is not None and h % tile_h == 0 and w % 16 == 0
                  and (tile_h * w) % 16 == 0)
            if not ok:
                if stage2_mode == "tiled":
                    raise ValueError("row-tiled stage2 needs W % 16 == 0 and H % tile_h == 0")
                mode = "fused"                 # fall back (may be tight on v7x VMEM)

        if mode == "fused":
            out2d = _s2_fused_call(y, stats1, gamma1, beta1, w2taps, gamma2, beta2,
                                   m, mt, h, w, groups, vlim2)
        else:
            conv2, stats2 = _s2_conv_stats_call(y, stats1, gamma1, beta1, w2taps, m, mt,
                                                h, w, tile_h, groups, vlim2)
            out2d = _s2_norm_call(y, conv2, stats1, stats2, gamma1, beta1, gamma2, beta2,
                                  tile_h * w, vlim2)

    out = out2d.reshape(n, h, w, cout)
    if not channels_last:
        out = jnp.transpose(out, (0, 3, 1, 2))     # back to NCHW (skipped w/ channels_last)
    return out


# --------------------------------------------------------------------------------------
# pure-JAX reference (same bf16 operand rounding and bf16 storage of the conv1
# intermediate as the kernels; everything else in f32)
# --------------------------------------------------------------------------------------
def _ref_groupnorm(y, gamma, beta, groups):
    n, h, w, c = y.shape
    cpg = c // groups
    yg = y.reshape(n, h, w, groups, cpg)
    mean = yg.mean(axis=(1, 2, 4), keepdims=True)
    var = yg.var(axis=(1, 2, 4), keepdims=True)
    yn = ((yg - mean) * lax.rsqrt(var + EPS)).reshape(n, h, w, c)
    return yn * gamma.reshape(1, 1, 1, c) + beta.reshape(1, 1, 1, c)


def ref_forward(x_nchw, w1, gamma1, beta1, w2=None, gamma2=None, beta2=None,
                stage2=False, groups=GROUPS):
    x = jnp.transpose(x_nchw, (0, 2, 3, 1))
    y = jnp.einsum("nhwc,cd->nhwd", x.astype(MXU_DTYPE), jnp.asarray(w1).astype(MXU_DTYPE),
                   preferred_element_type=jnp.float32)
    # mirror the kernels' bf16 HBM storage of the conv1 intermediate so the comparison
    # isolates kernel logic (the bf16-vs-f32 storage delta itself is ~1e-3)
    y = y.astype(STORE_DTYPE).astype(jnp.float32)
    y = jax.nn.silu(_ref_groupnorm(y, jnp.asarray(gamma1, jnp.float32),
                                   jnp.asarray(beta1, jnp.float32), groups))
    if stage2:
        c3 = lax.conv_general_dilated(
            y.astype(MXU_DTYPE), jnp.asarray(w2, jnp.float32).astype(MXU_DTYPE),
            window_strides=(1, 1), padding=((1, 1), (1, 1)),
            dimension_numbers=("NHWC", "HWIO", "NHWC"),
            preferred_element_type=jnp.float32)
        s2 = jax.nn.silu(_ref_groupnorm(c3, jnp.asarray(gamma2, jnp.float32),
                                        jnp.asarray(beta2, jnp.float32), groups))
        y = jax.nn.silu(y + s2)
    return jnp.transpose(y, (0, 3, 1, 2))


if __name__ == "__main__":
    N, Cin, Cout, H, W = 2, 16, 64, 16, 16          # GroupNorm(32, Cout) => Cout % 32 == 0

    keys = jax.random.split(jax.random.PRNGKey(0), 7)
    x = jax.random.normal(keys[0], (N, Cin, H, W), dtype=jnp.float32)
    w1 = 0.2 * jax.random.normal(keys[1], (Cin, Cout), dtype=jnp.float32)
    gamma1 = 1.0 + 0.1 * jax.random.normal(keys[2], (Cout,), dtype=jnp.float32)
    beta1 = 0.1 * jax.random.normal(keys[3], (Cout,), dtype=jnp.float32)
    w2 = 0.1 * jax.random.normal(keys[4], (3, 3, Cout, Cout), dtype=jnp.float32)   # HWIO
    gamma2 = 1.0 + 0.1 * jax.random.normal(keys[5], (Cout,), dtype=jnp.float32)
    beta2 = 0.1 * jax.random.normal(keys[6], (Cout,), dtype=jnp.float32)

    fwd = jax.jit(fuse_block_forward,
                  static_argnames=("stage2", "groups", "channels_last", "stage2_mode",
                                   "stage2_tile_h", "stage1_tile_rows"))

    # 1) stage2=False (Conv1x1 -> GN(32) -> SiLU); forced 64-row tiles exercise the
    #    multi-step GroupNorm-stats accumulation across the "arbitrary" grid axis.
    out_s1 = jax.block_until_ready(
        fwd(x, w1, gamma1, beta1, stage2=False, stage1_tile_rows=64))
    ref_s1 = ref_forward(x, w1, gamma1, beta1, stage2=False)
    assert out_s1.shape == (N, Cout, H, W)
    err = float(jnp.max(jnp.abs(out_s1 - ref_s1)))
    assert jnp.allclose(out_s1, ref_s1, atol=1e-2, rtol=1e-2), err

    ref_full = ref_forward(x, w1, gamma1, beta1, w2, gamma2, beta2, stage2=True)

    # 2) full FuseBlock, fused (single-kernel, whole-sample) stage 2.
    out_fused = jax.block_until_ready(
        fwd(x, w1, gamma1, beta1, w2, gamma2, beta2, stage2=True, stage2_mode="fused"))
    err = float(jnp.max(jnp.abs(out_fused - ref_full)))
    assert jnp.allclose(out_fused, ref_full, atol=1e-2, rtol=1e-2), err

    # 3) full FuseBlock, row-tiled stage 2 (forced 4-row tiles -> 4 tiles per sample with
    #    halos and two-phase GroupNorm-2).  The conv2 intermediate round-trips HBM in
    #    bf16, hence the slightly looser tolerance.
    out_tiled = jax.block_until_ready(
        fwd(x, w1, gamma1, beta1, w2, gamma2, beta2, stage2=True,
            stage2_mode="tiled", stage2_tile_h=4))
    err = float(jnp.max(jnp.abs(out_tiled - ref_full)))
    assert jnp.allclose(out_tiled, ref_full, atol=2e-2, rtol=2e-2), err

    print("KERNEL_OK")
</pallas_src>

<mosaic_0001>
module attributes {stable_mosaic.version = 11 : i64} {
  func.func @_s1_conv_stats_kernel(%arg0: i32, %arg1: i32, %arg2: memref<1x64x16xbf16, #tpu.memory_space<vmem>>, %arg3: memref<16x64xbf16, #tpu.memory_space<vmem>>, %arg4: memref<64x32xf32, #tpu.memory_space<vmem>>, %arg5: memref<32x64xf32, #tpu.memory_space<vmem>>, %arg6: memref<1x64x64xbf16, #tpu.memory_space<vmem>>, %arg7: memref<1x8x64xf32, #tpu.memory_space<vmem>>) attributes {dimension_semantics = [#tpu.dimension_semantics<parallel>, #tpu.dimension_semantics<arbitrary>], iteration_bounds = array<i64: 2, 4>, scalar_prefetch = 0 : i64, scratch_operands = 0 : i64, tpu.core_type = #tpu.core_type<tc>, window_params = [{transform_indices = @transform_0, window_bounds = array<i64: 1, 64, 16>}, {pipeline_mode = #tpu.pipeline_mode<synchronous>, transform_indices = @transform_1, window_bounds = array<i64: 16, 64>}, {pipeline_mode = #tpu.pipeline_mode<synchronous>, transform_indices = @transform_2, window_bounds = array<i64: 64, 32>}, {pipeline_mode = #tpu.pipeline_mode<synchronous>, transform_indices = @transform_3, window_bounds = array<i64: 32, 64>}, {transform_indices = @transform_4, window_bounds = array<i64: 1, 64, 64>}, {transform_indices = @transform_5, window_bounds = array<i64: 1, 8, 64>}]} {
    %c0_i32 = arith.constant 0 : i32
    %0 = arith.cmpi eq, %arg1, %c0_i32 : i32
    %1 = arith.extui %0 : i1 to i32
    %c0_i32_0 = arith.constant 0 : i32
    %2 = arith.cmpi ne, %1, %c0_i32_0 : i32
    scf.if %2 {
      %cst_23 = arith.constant 0.000000e+00 : f32
      %30 = vector.broadcast %cst_23 : f32 to vector<1x8x64xf32>
      %c0_24 = arith.constant 0 : index
      %c0_25 = arith.constant 0 : index
      %c0_26 = arith.constant 0 : index
      %31 = vector.load %arg7[%c0_24, %c0_25, %c0_26] : memref<1x8x64xf32, #tpu.memory_space<vmem>>, vector<1x8x64xf32>
      tpu.vector_store %arg7[%c0_24, %c0_25, %c0_26], %30 {strides = array<i32>} : memref<1x8x64xf32, #tpu.memory_space<vmem>>, vector<1x8x64xf32>,
    } else {
    }
    %c0 = arith.constant 0 : index
    %c0_1 = arith.constant 0 : index
    %c0_2 = arith.constant 0 : index
    %3 = vector.load %arg2[%c0, %c0_1, %c0_2] : memref<1x64x16xbf16, #tpu.memory_space<vmem>>, vector<1x64x16xbf16>
    %4 = vector.shape_cast %3 : vector<1x64x16xbf16> to vector<64x16xbf16>
    %c0_3 = arith.constant 0 : index
    %c0_4 = arith.constant 0 : index
    %5 = vector.load %arg3[%c0_3, %c0_4] : memref<16x64xbf16, #tpu.memory_space<vmem>>, vector<16x64xbf16>
    %cst = arith.constant dense<0.000000e+00> : vector<64x64xf32>
    %6 = tpu.matmul %4, %5, %cst {dimension_numbers = #tpu.dot_dimension_numbers<[1], [0], [0], [1], [0, 0, 1, 1], [], []>} : vector<64x16xbf16>, vector<16x64xbf16>, vector<64x64xf32> -> vector<64x64xf32>
    %7 = arith.truncf %6 : vector<64x64xf32> to vector<64x64xbf16>
    %c0_5 = arith.constant 0 : index
    %c0_6 = arith.constant 0 : index
    %c0_7 = arith.constant 0 : index
    %8 = vector.load %arg6[%c0_5, %c0_6, %c0_7] : memref<1x64x64xbf16, #tpu.memory_space<vmem>>, vector<1x64x64xbf16>
    %9 = vector.shape_cast %8 : vector<1x64x64xbf16> to vector<64x64xbf16>
    %10 = vector.shape_cast %7 : vector<64x64xbf16> to vector<1x64x64xbf16>
    tpu.vector_store %arg6[%c0_5, %c0_6, %c0_7], %10 {strides = array<i32>} : memref<1x64x64xbf16, #tpu.memory_space<vmem>>, vector<1x64x64xbf16>,
    %cst_8 = arith.constant 1.000000e+00 : f32
    %11 = vector.broadcast %cst_8 : f32 to vector<1x64xf32>
    %c0_9 = arith.constant 0 : index
    %c0_10 = arith.constant 0 : index
    %c0_11 = arith.constant 0 : index
    %12 = vector.load %arg7[%c0_9, %c0_10, %c0_11] : memref<1x8x64xf32, #tpu.memory_space<vmem>>, vector<1x1x64xf32>
    %13 = vector.shape_cast %12 : vector<1x1x64xf32> to vector<1x64xf32>
    %cst_12 = arith.constant dense<0.000000e+00> : vector<1x64xf32>
    %14 = tpu.matmul %11, %6, %cst_12 {dimension_numbers = #tpu.dot_dimension_numbers<[1], [0], [0], [1], [0, 0, 1, 1], [], []>} : vector<1x64xf32>, vector<64x64xf32>, vector<1x64xf32> -> vector<1x64xf32>
    %15 = arith.addf %13, %14 : vector<1x64xf32>
    %c0_13 = arith.constant 0 : index
    %c0_14 = arith.constant 0 : index
    %c0_15 = arith.constant 0 : index
    %16 = vector.load %arg7[%c0_13, %c0_14, %c0_15] : memref<1x8x64xf32, #tpu.memory_space<vmem>>, vector<1x1x64xf32>
    %17 = vector.shape_cast %16 : vector<1x1x64xf32> to vector<1x64xf32>
    %18 = vector.shape_cast %15 : vector<1x64xf32> to vector<1x1x64xf32>
    tpu.vector_store %arg7[%c0_13, %c0_14, %c0_15], %18 {strides = array<i32>} : memref<1x8x64xf32, #tpu.memory_space<vmem>>, vector<1x1x64xf32>,
    %c0_16 = arith.constant 0 : index
    %c1 = arith.constant 1 : index
    %c0_17 = arith.constant 0 : index
    %19 = vector.load %arg7[%c0_16, %c1, %c0_17] : memref<1x8x64xf32, #tpu.memory_space<vmem>>, vector<1x1x64xf32>
    %20 = vector.shape_cast %19 : vector<1x1x64xf32> to vector<1x64xf32>
    %21 = arith.mulf %6, %6 : vector<64x64xf32>
    %cst_18 = arith.constant dense<0.000000e+00> : vector<1x64xf32>
    %22 = tpu.matmul %11, %21, %cst_18 {dimension_numbers = #tpu.dot_dimension_numbers<[1], [0], [0], [1], [0, 0, 1, 1], [], []>} : vector<1x64xf32>, vector<64x64xf32>, vector<1x64xf32> -> vector<1x64xf32>
    %23 = arith.addf %20, %22 : vector<1x64xf32>
    %c0_19 = arith.constant 0 : index
    %c1_20 = arith.constant 1 : index
    %c0_21 = arith.constant 0 : index
    %24 = vector.load %arg7[%c0_19, %c1_20, %c0_21] : memref<1x8x64xf32, #tpu.memory_space<vmem>>, vector<1x1x64xf32>
    %25 = vector.shape_cast %24 : vector<1x1x64xf32> to vector<1x64xf32>
    %26 = vector.shape_cast %23 : vector<1x64xf32> to vector<1x1x64xf32>
    tpu.vector_store %arg7[%c0_19, %c1_20, %c0_21], %26 {strides = array<i32>} : memref<1x8x64xf32, #tpu.memory_space<vmem>>, vector<1x1x64xf32>,
    %c3_i32 = arith.constant 3 : i32
    %27 = arith.cmpi eq, %arg1, %c3_i32 : i32
    %28 = arith.extui %27 : i1 to i32
    %c0_i32_22 = arith.constant 0 : i32
    %29 = arith.cmpi ne, %28, %c0_i32_22 : i32
    scf.if %29 {
      %c0_23 = arith.constant 0 : index
      %c0_24 = arith.constant 0 : index
      %c0_25 = arith.constant 0 : index
      %30 = vector.load %arg7[%c0_23, %c0_24, %c0_25] : memref<1x8x64xf32, #tpu.memory_space<vmem>>, vector<1x1x64xf32>
      %31 = vector.shape_cast %30 : vector<1x1x64xf32> to vector<1x64xf32>
      %c0_26 = arith.constant 0 : index
      %c1_27 = arith.constant 1 : index
      %c0_28 = arith.constant 0 : index
      %32 = vector.load %arg7[%c0_26, %c1_27, %c0_28] : memref<1x8x64xf32, #tpu.memory_space<vmem>>, vector<1x1x64xf32>
      %33 = vector.shape_cast %32 : vector<1x1x64xf32> to vector<1x64xf32>
      %c0_29 = arith.constant 0 : index
      %c0_30 = arith.constant 0 : index
      %34 = vector.load %arg4[%c0_29, %c0_30] : memref<64x32xf32, #tpu.memory_space<vmem>>, vector<64x32xf32>
      %c0_31 = arith.constant 0 : index
      %c0_32 = arith.constant 0 : index
      %35 = vector.load %arg5[%c0_31, %c0_32] : memref<32x64xf32, #tpu.memory_space<vmem>>, vector<32x64xf32>
      %cst_33 = arith.constant dense<0.000000e+00> : vector<1x32xf32>
      %36 = tpu.matmul %31, %34, %cst_33 {dimension_numbers = #tpu.dot_dimension_numbers<[1], [0], [0], [1], [0, 0, 1, 1], [], []>} : vector<1x64xf32>, vector<64x32xf32>, vector<1x32xf32> -> vector<1x32xf32>
      %cst_34 = arith.constant dense<0.000000e+00> : vector<1x32xf32>
      %37 = tpu.matmul %33, %34, %cst_34 {dimension_numbers = #tpu.dot_dimension_numbers<[1], [0], [0], [1], [0, 0, 1, 1], [], []>} : vector<1x64xf32>, vector<64x32xf32>, vector<1x32xf32> -> vector<1x32xf32>
      %cst_35 = arith.constant 5.120000e+02 : f32
      %38 = vector.broadcast %cst_35 : f32 to vector<1x32xf32>
      %39 = arith.divf %36, %38 : vector<1x32xf32>
      %cst_36 = arith.constant 5.120000e+02 : f32
      %40 = vector.broadcast %cst_36 : f32 to vector<1x32xf32>
      %41 = arith.divf %37, %40 : vector<1x32xf32>
      %42 = arith.mulf %39, %39 : vector<1x32xf32>
      %43 = arith.subf %41, %42 : vector<1x32xf32>
      %cst_37 = arith.constant 0.000000e+00 : f32
      %44 = vector.broadcast %cst_37 : f32 to vector<1x32xf32>
      %45 = arith.maximumf %43, %44 : vector<1x32xf32>
      %cst_38 = arith.constant 9.99999974E-6 : f32
      %46 = vector.broadcast %cst_38 : f32 to vector<1x32xf32>
      %47 = arith.addf %45, %46 : vector<1x32xf32>
      %48 = math.rsqrt %47 : vector<1x32xf32>
      %cst_39 = arith.constant dense<0.000000e+00> : vector<1x64xf32>
      %49 = tpu.matmul %39, %35, %cst_39 {dimension_numbers = #tpu.dot_dimension_numbers<[1], [0], [0], [1], [0, 0, 1, 1], [], []>} : vector<1x32xf32>, vector<32x64xf32>, vector<1x64xf32> -> vector<1x64xf32>
      %cst_40 = arith.constant dense<0.000000e+00> : vector<1x64xf32>
      %50 = tpu.matmul %48, %35, %cst_40 {dimension_numbers = #tpu.dot_dimension_numbers<[1], [0], [0], [1], [0, 0, 1, 1], [], []>} : vector<1x32xf32>, vector<32x64xf32>, vector<1x64xf32> -> vector<1x64xf32>
      %c0_41 = arith.constant 0 : index
      %c0_42 = arith.constant 0 : index
      %c0_43 = arith.constant 0 : index
      %51 = vector.load %arg7[%c0_41, %c0_42, %c0_43] : memref<1x8x64xf32, #tpu.memory_space<vmem>>, vector<1x1x64xf32>
      %52 = vector.shape_cast %51 : vector<1x1x64xf32> to vector<1x64xf32>
      %53 = vector.shape_cast %49 : vector<1x64xf32> to vector<1x1x64xf32>
      tpu.vector_store %arg7[%c0_41, %c0_42, %c0_43], %53 {strides = array<i32>} : memref<1x8x64xf32, #tpu.memory_space<vmem>>, vector<1x1x64xf32>,
      %c0_44 = arith.constant 0 : index
      %c1_45 = arith.constant 1 : index
      %c0_46 = arith.constant 0 : index
      %54 = vector.load %arg7[%c0_44, %c1_45, %c0_46] : memref<1x8x64xf32, #tpu.memory_space<vmem>>, vector<1x1x64xf32>
      %55 = vector.shape_cast %54 : vector<1x1x64xf32> to vector<1x64xf32>
      %56 = vector.shape_cast %50 : vector<1x64xf32> to vector<1x1x64xf32>
      tpu.vector_store %arg7[%c0_44, %c1_45, %c0_46], %56 {strides = array<i32>} : memref<1x8x64xf32, #tpu.memory_space<vmem>>, vector<1x1x64xf32>,
    } else {
    }
    return
  }
  func.func @transform_0(%arg0: i32, %arg1: i32) -> (i32, i32, i32) {
    %c0_i32 = arith.constant 0 : i32
    %c0_i32_0 = arith.constant 0 : i32
    return %arg0, %arg1, %c0_i32 : i32, i32, i32
  }
  func.func @transform_1(%arg0: i32, %arg1: i32) -> (i32, i32) {
    %c0_i32 = arith.constant 0 : i32
    %c0_i32_0 = arith.constant 0 : i32
    %c0_i32_1 = arith.constant 0 : i32
    return %c0_i32, %c0_i32_0 : i32, i32
  }
  func.func @transform_2(%arg0: i32, %arg1: i32) -> (i32, i32) {
    %c0_i32 = arith.constant 0 : i32
    %c0_i32_0 = arith.constant 0 : i32
    %c0_i32_1 = arith.constant 0 : i32
    return %c0_i32, %c0_i32_0 : i32, i32
  }
  func.func @transform_3(%arg0: i32, %arg1: i32) -> (i32, i32) {
    %c0_i32 = arith.constant 0 : i32
    %c0_i32_0 = arith.constant 0 : i32
    %c0_i32_1 = arith.constant 0 : i32
    return %c0_i32, %c0_i32_0 : i32, i32
  }
  func.func @transform_4(%arg0: i32, %arg1: i32) -> (i32, i32, i32) {
    %c0_i32 = arith.constant 0 : i32
    %c0_i32_0 = arith.constant 0 : i32
    return %arg0, %arg1, %c0_i32 : i32, i32, i32
  }
  func.func @transform_5(%arg0: i32, %arg1: i32) -> (i32, i32, i32) {
    %c0_i32 = arith.constant 0 : i32
    %c0_i32_0 = arith.constant 0 : i32
    %c0_i32_1 = arith.constant 0 : i32
    return %arg0, %c0_i32, %c0_i32_0 : i32, i32, i32
  }
}

module attributes {stable_mosaic.version = 11 : i64} {
  func.func @_s1_norm_kernel(%arg0: i32, %arg1: i32, %arg2: memref<1x64x64xbf16, #tpu.memory_space<vmem>>, %arg3: memref<1x8x64xf32, #tpu.memory_space<vmem>>, %arg4: memref<1x64xf32, #tpu.memory_space<vmem>>, %arg5: memref<1x64xf32, #tpu.memory_space<vmem>>, %arg6: memref<1x64x64xf32, #tpu.memory_space<vmem>>) attributes {dimension_semantics = [#tpu.dimension_semantics<parallel>, #tpu.dimension_semantics<parallel>], iteration_bounds = array<i64: 2, 4>, scalar_prefetch = 0 : i64, scratch_operands = 0 : i64, tpu.core_type = #tpu.core_type<tc>, window_params = [{transform_indices = @transform_0, window_bounds = array<i64: 1, 64, 64>}, {transform_indices = @transform_1, window_bounds = array<i64: 1, 8, 64>}, {pipeline_mode = #tpu.pipeline_mode<synchronous>, transform_indices = @transform_2, window_bounds = array<i64: 1, 64>}, {pipeline_mode = #tpu.pipeline_mode<synchronous>, transform_indices = @transform_3, window_bounds = array<i64: 1, 64>}, {transform_indices = @transform_4, window_bounds = array<i64: 1, 64, 64>}]} {
    %c0 = arith.constant 0 : index
    %c0_0 = arith.constant 0 : index
    %c0_1 = arith.constant 0 : index
    %0 = vector.load %arg2[%c0, %c0_0, %c0_1] : memref<1x64x64xbf16, #tpu.memory_space<vmem>>, vector<1x64x64xbf16>
    %1 = vector.shape_cast %0 : vector<1x64x64xbf16> to vector<64x64xbf16>
    %c0_2 = arith.constant 0 : index
    %c0_3 = arith.constant 0 : index
    %c0_4 = arith.constant 0 : index
    %2 = vector.load %arg3[%c0_2, %c0_3, %c0_4] : memref<1x8x64xf32, #tpu.memory_space<vmem>>, vector<1x1x64xf32>
    %3 = vector.shape_cast %2 : vector<1x1x64xf32> to vector<1x64xf32>
    %c0_5 = arith.constant 0 : index
    %c1 = arith.constant 1 : index
    %c0_6 = arith.constant 0 : index
    %4 = vector.load %arg3[%c0_5, %c1, %c0_6] : memref<1x8x64xf32, #tpu.memory_space<vmem>>, vector<1x1x64xf32>
    %5 = vector.shape_cast %4 : vector<1x1x64xf32> to vector<1x64xf32>
    %c0_7 = arith.constant 0 : index
    %c0_8 = arith.constant 0 : index
    %6 = vector.load %arg4[%c0_7, %c0_8] : memref<1x64xf32, #tpu.memory_space<vmem>>, vector<1x64xf32>
    %c0_9 = arith.constant 0 : index
    %c0_10 = arith.constant 0 : index
    %7 = vector.load %arg5[%c0_9, %c0_10] : memref<1x64xf32, #tpu.memory_space<vmem>>, vector<1x64xf32>
    %8 = arith.extf %1 : vector<64x64xbf16> to vector<64x64xf32>
    %9 = vector.broadcast %3 : vector<1x64xf32> to vector<64x64xf32>
    %10 = arith.subf %8, %9 : vector<64x64xf32>
    %11 = vector.broadcast %5 : vector<1x64xf32> to vector<64x64xf32>
    %12 = arith.mulf %10, %11 : vector<64x64xf32>
    %13 = vector.broadcast %6 : vector<1x64xf32> to vector<64x64xf32>
    %14 = arith.mulf %12, %13 : vector<64x64xf32>
    %15 = vector.broadcast %7 : vector<1x64xf32> to vector<64x64xf32>
    %16 = arith.addf %14, %15 : vector<64x64xf32>
    %cst = arith.constant 5.000000e-01 : f32
    %17 = vector.broadcast %cst : f32 to vector<64x64xf32>
    %18 = arith.mulf %17, %16 : vector<64x64xf32>
    %cst_11 = arith.constant 5.000000e-01 : f32
    %19 = vector.broadcast %cst_11 : f32 to vector<64x64xf32>
    %20 = arith.mulf %19, %16 : vector<64x64xf32>
    %21 = math.tanh %20 : vector<64x64xf32>
    %cst_12 = arith.constant 1.000000e+00 : f32
    %22 = vector.broadcast %cst_12 : f32 to vector<64x64xf32>
    %23 = arith.addf %22, %21 : vector<64x64xf32>
    %24 = arith.mulf %18, %23 : vector<64x64xf32>
    %c0_13 = arith.constant 0 : index
    %c0_14 = arith.constant 0 : index
    %c0_15 = arith.constant 0 : index
    %25 = vector.load %arg6[%c0_13, %c0_14, %c0_15] : memref<1x64x64xf32, #tpu.memory_space<vmem>>, vector<1x64x64xf32>
    %26 = vector.shape_cast %25 : vector<1x64x64xf32> to vector<64x64xf32>
    %27 = vector.shape_cast %24 : vector<64x64xf32> to vector<1x64x64xf32>
    tpu.vector_store %arg6[%c0_13, %c0_14, %c0_15], %27 {strides = array<i32>} : memref<1x64x64xf32, #tpu.memory_space<vmem>>, vector<1x64x64xf32>,
    return
  }
  func.func @transform_0(%arg0: i32, %arg1: i32) -> (i32, i32, i32) {
    %c0_i32 = arith.constant 0 : i32
    %c0_i32_0 = arith.constant 0 : i32
    return %arg0, %arg1, %c0_i32 : i32, i32, i32
  }
  func.func @transform_1(%arg0: i32, %arg1: i32) -> (i32, i32, i32) {
    %c0_i32 = arith.constant 0 : i32
    %c0_i32_0 = arith.constant 0 : i32
    %c0_i32_1 = arith.constant 0 : i32
    return %arg0, %c0_i32, %c0_i32_0 : i32, i32, i32
  }
  func.func @transform_2(%arg0: i32, %arg1: i32) -> (i32, i32) {
    %c0_i32 = arith.constant 0 : i32
    %c0_i32_0 = arith.constant 0 : i32
    %c0_i32_1 = arith.constant 0 : i32
    return %c0_i32, %c0_i32_0 : i32, i32
  }
  func.func @transform_3(%arg0: i32, %arg1: i32) -> (i32, i32) {
    %c0_i32 = arith.constant 0 : i32
    %c0_i32_0 = arith.constant 0 : i32
    %c0_i32_1 = arith.constant 0 : i32
    return %c0_i32, %c0_i32_0 : i32, i32
  }
  func.func @transform_4(%arg0: i32, %arg1: i32) -> (i32, i32, i32) {
    %c0_i32 = arith.constant 0 : i32
    %c0_i32_0 = arith.constant 0 : i32
    return %arg0, %arg1, %c0_i32 : i32, i32, i32
  }
}

</mosaic_0001>

<llo_original>
// kernel: fuse_block_forward.3
$region0: #{fuse_block_forward.3}
  #allocation0 [shape = 'u32[]', space=smem, size = 0x4, offset = 0x4, fixed_abs, tag = 'smem constant byte address 0x4 - core index']
  #allocation1 [shape = 'u32[144,128]{1,0:T(1,128)}', space=vmem, size = 0x12000, scoped, tag = 'internal scratch']
  %s0 = inlined_call_operand.vmem [shape: bf16[2,256,64], index: 0, kind: input, shape index: {}]
  %s1 = inlined_call_operand.vmem [shape: f32[2,8,64], index: 1, kind: input, shape index: {}]
  %s2 = inlined_call_operand.vmem [shape: f32[1,64], index: 2, kind: input, shape index: {}]
  %s3 = inlined_call_operand.vmem [shape: f32[1,64], index: 3, kind: input, shape index: {}]
  %s4 = inlined_call_operand.hbm [shape: f32[2,256,64], index: 4, kind: output, shape index: {}]
  %s5 = sld [smem:[#allocation0]]
  $region49: #{fuse_block_forward.3} parent=0
    _
  %s7 = ssub.s32 1, %s5
  %s8 = scalar_select 0, %s7, %s5
  $region1: #{fuse_block_forward.3} parent=0
    #allocation2 [shape = 'u8[65536]{0}', space=vmem, size = 0x10000, scoped, tag = 'output window, operand 0']
    #allocation3 [shape = 's32[2]{0}', space=sflag, size = 0x8, scoped, tag = 'scoped memory for fuse_block_forward.3']
    %9 = vsyncpa [#allocation3], 0
    %s10 = scalar_lea.sflag [#allocation3], 1
    %11 = vsyncpa %s10, 0
    loop: start=0, step=1, limit=10
    $region2: #{fuse_block_forward.3} parent=1 // loop_pre_header
      _
    $region3: #{fuse_block_forward.3} parent=1 // loop_header
      %s13 = sphi 0, %s17
      %p14 = scmp.ge.s32.totalorder %s13, 10
      %s20 = sphi 0, %s32
      %s21 = sphi 0, %s28
      %s22 = sphi 0, %s20
      %s23 = sphi 0, %s21
      %s24 = sphi 0, %s22
      %s25 = sphi 0, %s23
      %s37 = sphi 0, %s39
      %s40 = sphi 0, %s37
      %s41 = sphi 0, %s40
      %s57 = sphi 0, %s41
      %s63 = sphi 0, %s65
      %s66 = sphi 0, %s63
      %s67 = sphi 0, %s66
      %s83 = sphi 0, %s67
      %s87 = sphi 0, %s87
      %s89 = sphi 0, %s87
      %s90 = sphi 0, %s89
      %s104 = sphi 0, %s90
      %s108 = sphi 0, %s108
      %s110 = sphi 0, %s108
      %s111 = sphi 0, %s110
      %s125 = sphi 0, %s111
      %s133 = sphi 0, %s135
      %s136 = sphi 0, %s133
      %s137 = sphi 0, %s136
      %s153 = sphi 0, %s137
    $region4: #{fuse_block_forward.3} parent=1 // loop_header_branch
      %16 = sbr.rel (%p14) target = $region8
    $region5: #{fuse_block_forward.3} parent=1 // loop_body
      %s18 = ssub.s32 %s13, 1
      %s19 = ssub.s32 %s13, 2
      %s26 = sadd.s32 1, %s21
      %p27 = scmp.ge.s32.totalorder %s26, 4
      %s28 = scalar_select %p27, 0, %s26
      %s29 = sadd.s32 1, %s20
      %s30 = scalar_select %p27, %s29, %s20
      %p31 = scmp.ge.s32.totalorder %s30, 2
      %s32 = scalar_select %p31, 0, %s30
      %s33 = ssub.s32 %s20, %s32
      %s34 = ssub.s32 %s21, %s28
      %s35 = sor.u32 %s33, %s34
      %p36 = scmp.eq.s32.totalorder %s35, 0
      %s38 = sadd.s32 %s37, 1
      %s39 = scalar_select %p36, %s37, %s38
      %p42 = pneg %p36
      %p43 = scmp.eq.s32.totalorder %s13, 7
      %p44 = por %p42, %p43
      %p45 = scmp.ne.s32.totalorder %s37, %s40
      %p46 = scmp.eq.s32.totalorder %s13, 0
      %p47 = por %p45, %p46
      %p48 = scmp.ne.s32.totalorder %s37, %s40
      %p49 = scmp.eq.s32.totalorder %s18, 7
      %p50 = por %p48, %p49
      %p51 = scmp.ne.s32.totalorder %s40, %s41
      %p52 = scmp.eq.s32.totalorder %s18, 0
      %p53 = por %p51, %p52
      %p54 = scmp.ne.s32.totalorder %s40, %s41
      %p55 = scmp.eq.s32.totalorder %s19, 7
      %p56 = por %p54, %p55
      %p58 = scmp.ne.s32.totalorder %s41, %s57
      %p59 = scmp.eq.s32.totalorder %s19, 0
      %p60 = por %p58, %p59
      %s61 = ssub.s32 %s20, %s32
      %p62 = scmp.eq.s32.totalorder %s61, 0
      %s64 = sadd.s32 %s63, 1
      %s65 = scalar_select %p62, %s63, %s64
      %p68 = pneg %p62
      %p69 = scmp.eq.s32.totalorder %s13, 7
      %p70 = por %p68, %p69
      %p71 = scmp.ne.s32.totalorder %s63, %s66
      %p72 = scmp.eq.s32.totalorder %s13, 0
      %p73 = por %p71, %p72
      %p74 = scmp.ne.s32.totalorder %s63, %s66
      %p75 = scmp.eq.s32.totalorder %s18, 7
      %p76 = por %p74, %p75
      %p77 = scmp.ne.s32.totalorder %s66, %s67
      %p78 = scmp.eq.s32.totalorder %s18, 0
      %p79 = por %p77, %p78
      %p80 = scmp.ne.s32.totalorder %s66, %s67
      %p81 = scmp.eq.s32.totalorder %s19, 7
      %p82 = por %p80, %p81
      %p84 = scmp.ne.s32.totalorder %s67, %s83
      %p85 = scmp.eq.s32.totalorder %s19, 0
      %p86 = por %p84, %p85
      %s88 = sadd.s32 %s87, 1
      %p91 = scmp.eq.s32.totalorder %s13, 7
      %p92 = scmp.ne.s32.totalorder %s87, %s89
      %p93 = scmp.eq.s32.totalorder %s13, 0
      %p94 = por %p92, %p93
      %p95 = scmp.ne.s32.totalorder %s87, %s89
      %p96 = scmp.eq.s32.totalorder %s18, 7
      %p97 = por %p95, %p96
      %p98 = scmp.ne.s32.totalorder %s89, %s90
      %p99 = scmp.eq.s32.totalorder %s18, 0
      %p100 = por %p98, %p99
      %p101 = scmp.ne.s32.totalorder %s89, %s90
      %p102 = scmp.eq.s32.totalorder %s19, 7
      %p103 = por %p101, %p102
      %p105 = scmp.ne.s32.totalorder %s90, %s104
      %p106 = scmp.eq.s32.totalorder %s19, 0
      %p107 = por %p105, %p106
      %s109 = sadd.s32 %s108, 1
      %p112 = scmp.eq.s32.totalorder %s13, 7
      %p113 = scmp.ne.s32.totalorder %s108, %s110
      %p114 = scmp.eq.s32.totalorder %s13, 0
      %p115 = por %p113, %p114
      %p116 = scmp.ne.s32.totalorder %s108, %s110
      %p117 = scmp.eq.s32.totalorder %s18, 7
      %p118 = por %p116, %p117
      %p119 = scmp.ne.s32.totalorder %s110, %s111
      %p120 = scmp.eq.s32.totalorder %s18, 0
      %p121 = por %p119, %p120
      %p122 = scmp.ne.s32.totalorder %s110, %s111
      %p123 = scmp.eq.s32.totalorder %s19, 7
      %p124 = por %p122, %p123
      %p126 = scmp.ne.s32.totalorder %s111, %s125
      %p127 = scmp.eq.s32.totalorder %s19, 0
      %p128 = por %p126, %p127
      %s129 = ssub.s32 %s20, %s32
      %s130 = ssub.s32 %s21, %s28
      %s131 = sor.u32 %s129, %s130
      %p132 = scmp.eq.s32.totalorder %s131, 0
      %s134 = sadd.s32 %s133, 1
      %s135 = scalar_select %p132, %s133, %s134
      %p138 = pneg %p132
      %p139 = scmp.eq.s32.totalorder %s13, 7
      %p140 = por %p138, %p139
      %p141 = scmp.ne.s32.totalorder %s133, %s136
      %p142 = scmp.eq.s32.totalorder %s13, 0
      %p143 = por %p141, %p142
      %p144 = scmp.ne.s32.totalorder %s133, %s136
      %p145 = scmp.eq.s32.totalorder %s18, 7
      %p146 = por %p144, %p145
      %p147 = scmp.ne.s32.totalorder %s136, %s137
      %p148 = scmp.eq.s32.totalorder %s18, 0
      %p149 = por %p147, %p148
      %p150 = scmp.ne.s32.totalorder %s136, %s137
      %p151 = scmp.eq.s32.totalorder %s19, 7
      %p152 = por %p150, %p151
      %p154 = scmp.ne.s32.totalorder %s137, %s153
      %p155 = scmp.eq.s32.totalorder %s19, 0
      %p156 = por %p154, %p155
      %p157 = scmp.le.s32.totalorder 1, %s13
      %p158 = scmp.lt.s32.totalorder %s13, 9
      %p159 = pnand %p157, %p158
      %p160 = pneg %p159
      // Predicated region
      $region9: #{fuse_block_forward.3} parent=5 // pred_check
        _
      $region10: #{fuse_block_forward.3} parent=5 // pred_check_branch
        %162 = sbr.rel (%p159) target = $region12
      $region11: #{fuse_block_forward.3} parent=5 // pred_region
        %s163 = ssub.s32 %s13, 1
        // Predicated region
        $region13: #{fuse_block_forward.3} parent=11 // pred_check
          %p164 = pneg %p100
        $region14: #{fuse_block_forward.3} parent=11 // pred_check_branch
          %166 = sbr.rel (%p164) target = $region16
        $region15: #{fuse_block_forward.3} parent=11 // pred_region
          _
        $region16: #{fuse_block_forward.3} parent=11 // pred_fallthru
          _
        // Predicated region
        $region17: #{fuse_block_forward.3} parent=11 // pred_check
          %p167 = pneg %p121
        $region18: #{fuse_block_forward.3} parent=11 // pred_check_branch
          %169 = sbr.rel (%p167) target = $region20
        $region19: #{fuse_block_forward.3} parent=11 // pred_region
          _
        $region20: #{fuse_block_forward.3} parent=11 // pred_fallthru
          _
      $region12: #{fuse_block_forward.3} parent=5 // pred_fallthru
        _
      %p170 = scmp.lt.s32.totalorder %s13, 8
      // Predicated region
      $region21: #{fuse_block_forward.3} parent=5 // pred_check
        %p171 = pneg %p170
      $region22: #{fuse_block_forward.3} parent=5 // pred_check_branch
        %173 = sbr.rel (%p171) target = $region24
      $region23: #{fuse_block_forward.3} parent=5 // pred_region
        // Predicated region
        $region25: #{fuse_block_forward.3} parent=23 // pred_check
          %p174 = pneg %p47
        $region26: #{fuse_block_forward.3} parent=23 // pred_check_branch
          %176 = sbr.rel (%p174) target = $region28
        $region27: #{fuse_block_forward.3} parent=23 // pred_region
          %s177 = smul.u32 8, %s21
          %p178 = scmp.lt.s32.totalorder %s20, 1
          %s179 = scalar_select %p178, %s20, 1
          %p180 = scmp.lt.s32.totalorder %s177, 31
          %s181 = scalar_select %p180, %s177, 31
          %s182 = smul.addr %s179, 32
          %s183 = sadd.s32 %s181, %s182
          %s184 = smul.addr %s183, 4
          %s185 = scalar_lea.vmem %s0, %s184
          %s186 = smul.u32 8, %s21
        $region28: #{fuse_block_forward.3} parent=23 // pred_fallthru
          _
        // Predicated region
        $region29: #{fuse_block_forward.3} parent=23 // pred_check
          %p187 = pneg %p73
        $region30: #{fuse_block_forward.3} parent=23 // pred_check_branch
          %189 = sbr.rel (%p187) target = $region32
        $region31: #{fuse_block_forward.3} parent=23 // pred_region
          %p190 = scmp.lt.s32.totalorder %s20, 1
          %s191 = scalar_select %p190, %s20, 1
          %s192 = smul.addr %s191, 8
          %s193 = scalar_lea.vmem %s1, %s192
        $region32: #{fuse_block_forward.3} parent=23 // pred_fallthru
          _
      $region24: #{fuse_block_forward.3} parent=5 // pred_fallthru
        _
      %p194 = scmp.le.s32.totalorder 1, %s13
      %p195 = scmp.lt.s32.totalorder %s13, 9
      %p196 = pnand %p194, %p195
      %p197 = pneg %p196
      // Predicated region
      $region33: #{fuse_block_forward.3} parent=5 // pred_check
        _
      $region34: #{fuse_block_forward.3} parent=5 // pred_check_branch
        %199 = sbr.rel (%p196) target = $region36
      $region35: #{fuse_block_forward.3} parent=5 // pred_region
        %s200 = ssub.s32 %s13, 1
        %s201 = smul.u32 8, %s23
        %p202 = scmp.lt.s32.totalorder %s22, 1
        %s203 = scalar_select %p202, %s22, 1
        %p204 = scmp.lt.s32.totalorder %s201, 31
        %s205 = scalar_select %p204, %s201, 31
        %s206 = smul.addr %s203, 32
        %s207 = sadd.s32 %s205, %s206
        %s208 = smul.addr %s207, 4
        %s209 = scalar_lea.vmem %s0, %s208
        %p210 = pneg %p53
        %p211 = pneg %p50
        %p212 = scmp.lt.s32.totalorder %s22, 1
        %s213 = scalar_select %p212, %s22, 1
        %s214 = smul.addr %s213, 8
        %s215 = scalar_lea.vmem %s1, %s214
        %p216 = pneg %p79
        %p217 = pneg %p76
        %p218 = pneg %p100
        %p219 = pneg %p97
        %p220 = pneg %p121
        %p221 = pneg %p118
        %p222 = pneg %p149
        %p223 = pneg %p146
        %s224 = sand.u32 %s136, 1
        %s225 = scalar_lea.sflag [#allocation3], %s224
        %s226 = sand.u32 %s136, 1
        %s227 = smul.addr %s226, 64
        %s228 = scalar_lea.vmem [#allocation2], %s227
        %s229 = smul.u32 8, %s23
        %p230 = scmp.lt.s32.totalorder %s22, 1
        %s231 = scalar_select %p230, %s22, 1
        %p232 = scmp.lt.s32.totalorder %s229, 31
        %s233 = scalar_select %p232, %s229, 31
        %s234 = smul.addr %s231, 32
        %s235 = sadd.s32 %s233, %s234
        %s236 = smul.addr %s235, 4
        %s237 = scalar_lea.vmem %s0, %s236
        %s238 = smul.u32 8, %s23
        %p239 = scmp.lt.s32.totalorder %s22, 1
        %s240 = scalar_select %p239, %s22, 1
        %s241 = smul.addr %s240, 8
        %s242 = scalar_lea.vmem %s1, %s241
        %s243 = smul.u32 8, %s23
        %v244 = vld [vmem:[%s237] sm:$0xf]
        %v245 = vld [vmem:[%s237 + $0x4] sm:$0xf]
        %v246 = vld [vmem:[%s237 + $0x8] sm:$0xf]
        %v247 = vld [vmem:[%s237 + $0xc] sm:$0xf]
        %v248 = vld [vmem:[%s237 + $0x10] sm:$0xf]
        %v249 = vld [vmem:[%s237 + $0x14] sm:$0xf]
        %v250 = vld [vmem:[%s237 + $0x18] sm:$0xf]
        %v251 = vld [vmem:[%s237 + $0x1c] sm:$0xf]
        %v252 = vld [vmem:[%s242] sm:$0x1]
        %v253 = vld [vmem:[%s242 + $0x1] sm:$0x1]
        %v254 = vld [vmem:[%s2] sm:$0x1]
        %v255 = vld [vmem:[%s3] sm:$0x1]
        %v256 = vunpack.c.l.bf16 %v244
        %v257 = vunpack.c.l.bf16 %v245
        %v258 = vunpack.c.l.bf16 %v246
        %v259 = vunpack.c.l.bf16 %v247
        %v260 = vunpack.c.l.bf16 %v248
        %v261 = vunpack.c.l.bf16 %v249
        %v262 = vunpack.c.l.bf16 %v250
        %v263 = vunpack.c.l.bf16 %v251
        %v264 = vlaneseq
        %v265 = vshrl.u32 %v264, 7
        %v266 = vsub.s32 0, %v265
        %v267 = vrot.slane %v252, %v266
        %v268 = vsub.f32 %v256, %v267
        %v269 = vsub.f32 %v257, %v267
        %v270 = vsub.f32 %v258, %v267
        %v271 = vsub.f32 %v259, %v267
        %v272 = vsub.f32 %v260, %v267
        %v273 = vsub.f32 %v261, %v267
        %v274 = vsub.f32 %v262, %v267
        %v275 = vsub.f32 %v263, %v267
        %v276 = vlaneseq
        %v277 = vshrl.u32 %v276, 7
        %v278 = vsub.s32 0, %v277
        %v279 = vrot.slane %v253, %v278
        %v280 = vmul.f32 %v268, %v279
        %v281 = vmul.f32 %v269, %v279
        %v282 = vmul.f32 %v270, %v279
        %v283 = vmul.f32 %v271, %v279
        %v284 = vmul.f32 %v272, %v279
        %v285 = vmul.f32 %v273, %v279
        %v286 = vmul.f32 %v274, %v279
        %v287 = vmul.f32 %v275, %v279
        %v289 = vlaneseq
        %v290 = vshrl.u32 %v289, 7
        %v291 = vsub.s32 0, %v290
        %v292 = vrot.slane %v254, %v291
        %v294 = vmul.f32 %v280, %v292
        %v295 = vmul.f32 %v281, %v292
        %v296 = vmul.f32 %v282, %v292
        %v297 = vmul.f32 %v283, %v292
        %v298 = vmul.f32 %v284, %v292
        %v299 = vmul.f32 %v285, %v292
        %v300 = vmul.f32 %v286, %v292
        %v301 = vmul.f32 %v287, %v292
        %v303 = vlaneseq
        %v304 = vshrl.u32 %v303, 7
        %v305 = vsub.s32 0, %v304
        %v306 = vrot.slane %v255, %v305
        %v308 = vadd.f32 %v294, %v306
        %v309 = vadd.f32 %v295, %v306
        %v310 = vadd.f32 %v296, %v306
        %v311 = vadd.f32 %v297, %v306
        %v312 = vadd.f32 %v298, %v306
        %v313 = vadd.f32 %v299, %v306
        %v314 = vadd.f32 %v300, %v306
        %v315 = vadd.f32 %v301, %v306
        %v316 = vmul.f32 %v308, 0.5
        %v317 = vmul.f32 %v309, 0.5
        %v318 = vmul.f32 %v310, 0.5
        %v319 = vmul.f32 %v311, 0.5
        %v320 = vmul.f32 %v312, 0.5
        %v321 = vmul.f32 %v313, 0.5
        %v322 = vmul.f32 %v314, 0.5
        %v323 = vmul.f32 %v315, 0.5
        %v324 = vtanh.pop %v316
        %v325 = vtanh.pop %v317
        %v326 = vtanh.pop %v318
        %v327 = vtanh.pop %v319
        %v328 = vtanh.pop %v320
        %v329 = vtanh.pop %v321
        %v330 = vtanh.pop %v322
        %v331 = vtanh.pop %v323
        %v332 = vadd.f32 %v324, 1.0
        %v333 = vadd.f32 %v325, 1.0
        %v334 = vadd.f32 %v326, 1.0
        %v335 = vadd.f32 %v327, 1.0
        %v336 = vadd.f32 %v328, 1.0
        %v337 = vadd.f32 %v329, 1.0
        %v338 = vadd.f32 %v330, 1.0
        %v339 = vadd.f32 %v331, 1.0
        %v340 = vmul.f32 %v316, %v332
        %v341 = vmul.f32 %v317, %v333
        %v342 = vmul.f32 %v318, %v334
        %v343 = vmul.f32 %v319, %v335
        %v344 = vmul.f32 %v320, %v336
        %v345 = vmul.f32 %v321, %v337
        %v346 = vmul.f32 %v322, %v338
        %v347 = vmul.f32 %v323, %v339
        %vm348 = vcmask 523264
        %349 = vst.msk [vmem:[%s228] sm:$0xff] %vm348, %v340
        %350 = vst.msk [vmem:[%s228 + $0x8] sm:$0xff] %vm348, %v341
        %351 = vst.msk [vmem:[%s228 + $0x10] sm:$0xff] %vm348, %v342
        %352 = vst.msk [vmem:[%s228 + $0x18] sm:$0xff] %vm348, %v343
        %353 = vst.msk [vmem:[%s228 + $0x20] sm:$0xff] %vm348, %v344
        %354 = vst.msk [vmem:[%s228 + $0x28] sm:$0xff] %vm348, %v345
        %355 = vst.msk [vmem:[%s228 + $0x30] sm:$0xff] %vm348, %v346
        %356 = vst.msk [vmem:[%s228 + $0x38] sm:$0xff] %vm348, %v347
        %s357 = sand.u32 %s136, 1
        %s358 = scalar_lea.sflag [#allocation3], %s357
        %s359 = sand.u32 %s136, 1
        %s360 = smul.addr %s359, 64
        %s361 = scalar_lea.vmem [#allocation2], %s360
        // Predicated region
        $region37: #{fuse_block_forward.3} parent=35 // pred_check
          %p362 = pneg %p146
        $region38: #{fuse_block_forward.3} parent=35 // pred_check_branch
          %364 = sbr.rel (%p362) target = $region40
        $region39: #{fuse_block_forward.3} parent=35 // pred_region
          %s365 = smul.u32 8, %s23
          %s367 = ssub.s32 1024, 1024
          %368 = vsyncadd %s358, %s367
          %s369 = smul.addr %s22, 32
          %s370 = sadd.s32 %s365, %s369
          %s371 = smul.addr %s370, 128
          %s372 = scalar_lea.hbm %s4, %s371
          %s373 = sshll.u32 %s361, 4
          %s374 = int_to_ptr.vmem [resolvable:$true] %s373
          %379 = dma.vmem_to_hbm [thread:$0]  %s374, 1024, %s372, %s358, 128, 128, 8
        $region40: #{fuse_block_forward.3} parent=35 // pred_fallthru
          _
      $region36: #{fuse_block_forward.3} parent=5 // pred_fallthru
        _
      %p380 = scmp.le.s32.totalorder 2, %s13
      // Predicated region
      $region41: #{fuse_block_forward.3} parent=5 // pred_check
        %p381 = pneg %p380
      $region42: #{fuse_block_forward.3} parent=5 // pred_check_branch
        %383 = sbr.rel (%p381) target = $region44
      $region43: #{fuse_block_forward.3} parent=5 // pred_region
        %s384 = ssub.s32 %s13, 2
        // Predicated region
        $region45: #{fuse_block_forward.3} parent=43 // pred_check
          %p385 = pneg %p152
        $region46: #{fuse_block_forward.3} parent=43 // pred_check_branch
          %387 = sbr.rel (%p385) target = $region48
        $region47: #{fuse_block_forward.3} parent=43 // pred_region
          %s388 = sand.u32 %s137, 1
          %s389 = scalar_lea.sflag [#allocation3], %s388
          %s390 = sand.u32 %s137, 1
          %s391 = smul.addr %s390, 64
          %s392 = scalar_lea.vmem [#allocation2], %s391
          %393 = dma.done %s389, 1024
        $region48: #{fuse_block_forward.3} parent=43 // pred_fallthru
          _
      $region44: #{fuse_block_forward.3} parent=5 // pred_fallthru
        _
    $region6: #{fuse_block_forward.3} parent=1 // loop_footer
      %s17 = sadd.s32 1, %s13
    $region7: #{fuse_block_forward.3} parent=1 // loop_footer_branch
      %12 = sbr.rel target = $region3
    $region8: #{fuse_block_forward.3} parent=1 // loop_exit
      _
    %394 = vsyncpa [#allocation3], 1
    %s395 = scalar_lea.sflag [#allocation3], 1
    %396 = vsyncpa %s395, 1

// kernel: fuse_block_forward.2
$region0: #{fuse_block_forward.2}
  #allocation0 [shape = 'u32[]', space=smem, size = 0x4, offset = 0x4, fixed_abs, tag = 'smem constant byte address 0x4 - core index']
  #allocation1 [shape = 'u32[144,128]{1,0:T(1,128)}', space=vmem, size = 0x12000, scoped, tag = 'internal scratch']
  %s0 = inlined_call_operand.vmem [shape: bf16[2,256,16], index: 0, kind: input, shape index: {}]
  %s1 = inlined_call_operand.vmem [shape: bf16[16,64], index: 1, kind: input, shape index: {}]
  %s2 = inlined_call_operand.vmem [shape: f32[64,32], index: 2, kind: input, shape index: {}]
  %s3 = inlined_call_operand.vmem [shape: f32[32,64], index: 3, kind: input, shape index: {}]
  %s4 = inlined_call_operand.vmem [shape: bf16[2,256,64], index: 4, kind: output, shape index: {0}]
  %s5 = inlined_call_operand.vmem [shape: f32[2,8,64], index: 5, kind: output, shape index: {1}]
  %6 = xla_tuple %s4, %s5
  %s7 = sld [smem:[#allocation0]]
  $region65: #{fuse_block_forward.2} parent=0
    _
  %s9 = ssub.s32 1, %s7
  %s10 = scalar_select 0, %s9, %s7
  loop: start=0, step=1, limit=10
  $region2: #{fuse_block_forward.2} parent=0 // loop_pre_header
    _
  $region3: #{fuse_block_forward.2} parent=0 // loop_header
    %s12 = sphi 0, %s16
    %p13 = scmp.ge.s32.totalorder %s12, 10
    %s19 = sphi 0, %s31
    %s20 = sphi 0, %s27
    %s21 = sphi 0, %s19
    %s22 = sphi 0, %s20
    %s23 = sphi 0, %s21
    %s24 = sphi 0, %s22
    %s36 = sphi 0, %s38
    %s39 = sphi 0, %s36
    %s40 = sphi 0, %s39
    %s56 = sphi 0, %s40
    %s60 = sphi 0, %s60
    %s62 = sphi 0, %s60
    %s63 = sphi 0, %s62
    %s77 = sphi 0, %s63
    %s81 = sphi 0, %s81
    %s83 = sphi 0, %s81
    %s84 = sphi 0, %s83
    %s98 = sphi 0, %s84
    %s102 = sphi 0, %s102
    %s104 = sphi 0, %s102
    %s105 = sphi 0, %s104
    %s119 = sphi 0, %s105
    %s127 = sphi 0, %s129
    %s130 = sphi 0, %s127
    %s131 = sphi 0, %s130
    %s147 = sphi 0, %s131
    %s153 = sphi 0, %s155
    %s156 = sphi 0, %s153
    %s157 = sphi 0, %s156
    %s173 = sphi 0, %s157
  $region4: #{fuse_block_forward.2} parent=0 // loop_header_branch
    %15 = sbr.rel (%p13) target = $region8
  $region5: #{fuse_block_forward.2} parent=0 // loop_body
    %s17 = ssub.s32 %s12, 1
    %s18 = ssub.s32 %s12, 2
    %s25 = sadd.s32 1, %s20
    %p26 = scmp.ge.s32.totalorder %s25, 4
    %s27 = scalar_select %p26, 0, %s25
    %s28 = sadd.s32 1, %s19
    %s29 = scalar_select %p26, %s28, %s19
    %p30 = scmp.ge.s32.totalorder %s29, 2
    %s31 = scalar_select %p30, 0, %s29
    %s32 = ssub.s32 %s19, %s31
    %s33 = ssub.s32 %s20, %s27
    %s34 = sor.u32 %s32, %s33
    %p35 = scmp.eq.s32.totalorder %s34, 0
    %s37 = sadd.s32 %s36, 1
    %s38 = scalar_select %p35, %s36, %s37
    %p41 = pneg %p35
    %p42 = scmp.eq.s32.totalorder %s12, 7
    %p43 = por %p41, %p42
    %p44 = scmp.ne.s32.totalorder %s36, %s39
    %p45 = scmp.eq.s32.totalorder %s12, 0
    %p46 = por %p44, %p45
    %p47 = scmp.ne.s32.totalorder %s36, %s39
    %p48 = scmp.eq.s32.totalorder %s17, 7
    %p49 = por %p47, %p48
    %p50 = scmp.ne.s32.totalorder %s39, %s40
    %p51 = scmp.eq.s32.totalorder %s17, 0
    %p52 = por %p50, %p51
    %p53 = scmp.ne.s32.totalorder %s39, %s40
    %p54 = scmp.eq.s32.totalorder %s18, 7
    %p55 = por %p53, %p54
    %p57 = scmp.ne.s32.totalorder %s40, %s56
    %p58 = scmp.eq.s32.totalorder %s18, 0
    %p59 = por %p57, %p58
    %s61 = sadd.s32 %s60, 1
    %p64 = scmp.eq.s32.totalorder %s12, 7
    %p65 = scmp.ne.s32.totalorder %s60, %s62
    %p66 = scmp.eq.s32.totalorder %s12, 0
    %p67 = por %p65, %p66
    %p68 = scmp.ne.s32.totalorder %s60, %s62
    %p69 = scmp.eq.s32.totalorder %s17, 7
    %p70 = por %p68, %p69
    %p71 = scmp.ne.s32.totalorder %s62, %s63
    %p72 = scmp.eq.s32.totalorder %s17, 0
    %p73 = por %p71, %p72
    %p74 = scmp.ne.s32.totalorder %s62, %s63
    %p75 = scmp.eq.s32.totalorder %s18, 7
    %p76 = por %p74, %p75
    %p78 = scmp.ne.s32.totalorder %s63, %s77
    %p79 = scmp.eq.s32.totalorder %s18, 0
    %p80 = por %p78, %p79
    %s82 = sadd.s32 %s81, 1
    %p85 = scmp.eq.s32.totalorder %s12, 7
    %p86 = scmp.ne.s32.totalorder %s81, %s83
    %p87 = scmp.eq.s32.totalorder %s12, 0
    %p88 = por %p86, %p87
    %p89 = scmp.ne.s32.totalorder %s81, %s83
    %p90 = scmp.eq.s32.totalorder %s17, 7
    %p91 = por %p89, %p90
    %p92 = scmp.ne.s32.totalorder %s83, %s84
    %p93 = scmp.eq.s32.totalorder %s17, 0
    %p94 = por %p92, %p93
    %p95 = scmp.ne.s32.totalorder %s83, %s84
    %p96 = scmp.eq.s32.totalorder %s18, 7
    %p97 = por %p95, %p96
    %p99 = scmp.ne.s32.totalorder %s84, %s98
    %p100 = scmp.eq.s32.totalorder %s18, 0
    %p101 = por %p99, %p100
    %s103 = sadd.s32 %s102, 1
    %p106 = scmp.eq.s32.totalorder %s12, 7
    %p107 = scmp.ne.s32.totalorder %s102, %s104
    %p108 = scmp.eq.s32.totalorder %s12, 0
    %p109 = por %p107, %p108
    %p110 = scmp.ne.s32.totalorder %s102, %s104
    %p111 = scmp.eq.s32.totalorder %s17, 7
    %p112 = por %p110, %p111
    %p113 = scmp.ne.s32.totalorder %s104, %s105
    %p114 = scmp.eq.s32.totalorder %s17, 0
    %p115 = por %p113, %p114
    %p116 = scmp.ne.s32.totalorder %s104, %s105
    %p117 = scmp.eq.s32.totalorder %s18, 7
    %p118 = por %p116, %p117
    %p120 = scmp.ne.s32.totalorder %s105, %s119
    %p121 = scmp.eq.s32.totalorder %s18, 0
    %p122 = por %p120, %p121
    %s123 = ssub.s32 %s19, %s31
    %s124 = ssub.s32 %s20, %s27
    %s125 = sor.u32 %s123, %s124
    %p126 = scmp.eq.s32.totalorder %s125, 0
    %s128 = sadd.s32 %s127, 1
    %s129 = scalar_select %p126, %s127, %s128
    %p132 = pneg %p126
    %p133 = scmp.eq.s32.totalorder %s12, 7
    %p134 = por %p132, %p133
    %p135 = scmp.ne.s32.totalorder %s127, %s130
    %p136 = scmp.eq.s32.totalorder %s12, 0
    %p137 = por %p135, %p136
    %p138 = scmp.ne.s32.totalorder %s127, %s130
    %p139 = scmp.eq.s32.totalorder %s17, 7
    %p140 = por %p138, %p139
    %p141 = scmp.ne.s32.totalorder %s130, %s131
    %p142 = scmp.eq.s32.totalorder %s17, 0
    %p143 = por %p141, %p142
    %p144 = scmp.ne.s32.totalorder %s130, %s131
    %p145 = scmp.eq.s32.totalorder %s18, 7
    %p146 = por %p144, %p145
    %p148 = scmp.ne.s32.totalorder %s131, %s147
    %p149 = scmp.eq.s32.totalorder %s18, 0
    %p150 = por %p148, %p149
    %s151 = ssub.s32 %s19, %s31
    %p152 = scmp.eq.s32.totalorder %s151, 0
    %s154 = sadd.s32 %s153, 1
    %s155 = scalar_select %p152, %s153, %s154
    %p158 = pneg %p152
    %p159 = scmp.eq.s32.totalorder %s12, 7
    %p160 = por %p158, %p159
    %p161 = scmp.ne.s32.totalorder %s153, %s156
    %p162 = scmp.eq.s32.totalorder %s12, 0
    %p163 = por %p161, %p162
    %p164 = scmp.ne.s32.totalorder %s153, %s156
    %p165 = scmp.eq.s32.totalorder %s17, 7
    %p166 = por %p164, %p165
    %p167 = scmp.ne.s32.totalorder %s156, %s157
    %p168 = scmp.eq.s32.totalorder %s17, 0
    %p169 = por %p167, %p168
    %p170 = scmp.ne.s32.totalorder %s156, %s157
    %p171 = scmp.eq.s32.totalorder %s18, 7
    %p172 = por %p170, %p171
    %p174 = scmp.ne.s32.totalorder %s157, %s173
    %p175 = scmp.eq.s32.totalorder %s18, 0
    %p176 = por %p174, %p175
    %p177 = scmp.le.s32.totalorder 1, %s12
    %p178 = scmp.lt.s32.totalorder %s12, 9
    %p179 = pnand %p177, %p178
    %p180 = pneg %p179
    // Predicated region
    $region9: #{fuse_block_forward.2} parent=5 // pred_check
      _
    $region10: #{fuse_block_forward.2} parent=5 // pred_check_branch
      %182 = sbr.rel (%p179) target = $region12
    $region11: #{fuse_block_forward.2} parent=5 // pred_region
      %s183 = ssub.s32 %s12, 1
      // Predicated region
      $region13: #{fuse_block_forward.2} parent=11 // pred_check
        %p184 = pneg %p73
      $region14: #{fuse_block_forward.2} parent=11 // pred_check_branch
        %186 = sbr.rel (%p184) target = $region16
      $region15: #{fuse_block_forward.2} parent=11 // pred_region
        _
      $region16: #{fuse_block_forward.2} parent=11 // pred_fallthru
        _
      // Predicated region
      $region17: #{fuse_block_forward.2} parent=11 // pred_check
        %p187 = pneg %p94
      $region18: #{fuse_block_forward.2} parent=11 // pred_check_branch
        %189 = sbr.rel (%p187) target = $region20
      $region19: #{fuse_block_forward.2} parent=11 // pred_region
        _
      $region20: #{fuse_block_forward.2} parent=11 // pred_fallthru
        _
      // Predicated region
      $region21: #{fuse_block_forward.2} parent=11 // pred_check
        %p190 = pneg %p115
      $region22: #{fuse_block_forward.2} parent=11 // pred_check_branch
        %192 = sbr.rel (%p190) target = $region24
      $region23: #{fuse_block_forward.2} parent=11 // pred_region
        _
      $region24: #{fuse_block_forward.2} parent=11 // pred_fallthru
        _
    $region12: #{fuse_block_forward.2} parent=5 // pred_fallthru
      _
    %p193 = scmp.lt.s32.totalorder %s12, 8
    // Predicated region
    $region25: #{fuse_block_forward.2} parent=5 // pred_check
      %p194 = pneg %p193
    $region26: #{fuse_block_forward.2} parent=5 // pred_check_branch
      %196 = sbr.rel (%p194) target = $region28
    $region27: #{fuse_block_forward.2} parent=5 // pred_region
      // Predicated region
      $region29: #{fuse_block_forward.2} parent=27 // pred_check
        %p197 = pneg %p46
      $region30: #{fuse_block_forward.2} parent=27 // pred_check_branch
        %199 = sbr.rel (%p197) target = $region32
      $region31: #{fuse_block_forward.2} parent=27 // pred_region
        %s200 = smul.u32 8, %s20
        %p201 = scmp.lt.s32.totalorder %s19, 1
        %s202 = scalar_select %p201, %s19, 1
        %p203 = scmp.lt.s32.totalorder %s200, 31
        %s204 = scalar_select %p203, %s200, 31
        %s205 = smul.addr %s202, 32
        %s206 = sadd.s32 %s204, %s205
        %s207 = smul.addr %s206, 4
        %s208 = scalar_lea.vmem %s0, %s207
        %s209 = smul.u32 8, %s20
      $region32: #{fuse_block_forward.2} parent=27 // pred_fallthru
        _
    $region28: #{fuse_block_forward.2} parent=5 // pred_fallthru
      _
    %p210 = scmp.le.s32.totalorder 1, %s12
    %p211 = scmp.lt.s32.totalorder %s12, 9
    %p212 = pnand %p210, %p211
    %p213 = pneg %p212
    // Predicated region
    $region33: #{fuse_block_forward.2} parent=5 // pred_check
      _
    $region34: #{fuse_block_forward.2} parent=5 // pred_check_branch
      %215 = sbr.rel (%p212) target = $region36
    $region35: #{fuse_block_forward.2} parent=5 // pred_region
      %s216 = ssub.s32 %s12, 1
      %s217 = smul.u32 8, %s22
      %p218 = scmp.lt.s32.totalorder %s21, 1
      %s219 = scalar_select %p218, %s21, 1
      %p220 = scmp.lt.s32.totalorder %s217, 31
      %s221 = scalar_select %p220, %s217, 31
      %s222 = smul.addr %s219, 32
      %s223 = sadd.s32 %s221, %s222
      %s224 = smul.addr %s223, 4
      %s225 = scalar_lea.vmem %s0, %s224
      %p226 = pneg %p52
      %p227 = pneg %p49
      %p228 = pneg %p73
      %p229 = pneg %p70
      %p230 = pneg %p94
      %p231 = pneg %p91
      %p232 = pneg %p115
      %p233 = pneg %p112
      %p234 = pneg %p143
      %p235 = pneg %p140
      %s236 = smul.u32 8, %s22
      %p237 = scmp.lt.s32.totalorder %s21, 1
      %s238 = scalar_select %p237, %s21, 1
      %p239 = scmp.lt.s32.totalorder %s236, 31
      %s240 = scalar_select %p239, %s236, 31
      %s241 = smul.addr %s238, 32
      %s242 = sadd.s32 %s240, %s241
      %s243 = smul.addr %s242, 4
      %s244 = scalar_lea.vmem %s4, %s243
      %p245 = pneg %p169
      %p246 = pneg %p166
      %p247 = scmp.lt.s32.totalorder %s21, 1
      %s248 = scalar_select %p247, %s21, 1
      %s249 = smul.addr %s248, 8
      %s250 = scalar_lea.vmem %s5, %s249
      %s251 = smul.u32 8, %s22
      %p252 = scmp.lt.s32.totalorder %s21, 1
      %s253 = scalar_select %p252, %s21, 1
      %p254 = scmp.lt.s32.totalorder %s251, 31
      %s255 = scalar_select %p254, %s251, 31
      %s256 = smul.addr %s253, 32
      %s257 = sadd.s32 %s255, %s256
      %s258 = smul.addr %s257, 4
      %s259 = scalar_lea.vmem %s0, %s258
      %s260 = smul.u32 8, %s22
      %s261 = smul.u32 8, %s22
      %p262 = scmp.lt.s32.totalorder %s21, 1
      %s263 = scalar_select %p262, %s21, 1
      %p264 = scmp.lt.s32.totalorder %s261, 31
      %s265 = scalar_select %p264, %s261, 31
      %s266 = smul.addr %s263, 32
      %s267 = sadd.s32 %s265, %s266
      %s268 = smul.addr %s267, 4
      %s269 = scalar_lea.vmem %s4, %s268
      %s270 = smul.u32 8, %s22
      %p271 = scmp.lt.s32.totalorder %s21, 1
      %s272 = scalar_select %p271, %s21, 1
      %s273 = smul.addr %s272, 8
      %s274 = scalar_lea.vmem %s5, %s273
      %p276 = scmp.eq.s32.totalorder %s22, 0
      // Predicated region
      $region37: #{fuse_block_forward.2} parent=35 // pred_check
        %p277 = pneg %p276
      $region38: #{fuse_block_forward.2} parent=35 // pred_check_branch
        %279 = sbr.rel (%p277) target = $region40
      $region39: #{fuse_block_forward.2} parent=35 // pred_region
        %vm280 = vcmask 523264
        %281 = vst.msk [vmem:[%s274] sm:$0xff] %vm280, 0.0
      $region40: #{fuse_block_forward.2} parent=35 // pred_fallthru
        _
      %v282 = vld [vmem:[%s259] sm:$0xf]
      %v283 = vld [vmem:[%s259 + $0x4] sm:$0xf]
      %v284 = vld [vmem:[%s259 + $0x8] sm:$0xf]
      %v285 = vld [vmem:[%s259 + $0xc] sm:$0xf]
      %v286 = vld [vmem:[%s259 + $0x10] sm:$0xf]
      %v287 = vld [vmem:[%s259 + $0x14] sm:$0xf]
      %v288 = vld [vmem:[%s259 + $0x18] sm:$0xf]
      %v289 = vld [vmem:[%s259 + $0x1c] sm:$0xf]
      %v290 = vld [vmem:[%s1] sm:$0xf]
      %v291 = vld [vmem:[%s1 + $0x4] sm:$0xf]
      %v300 = vunpack.c.l.b16 %v282
      %v301 = vunpack.c.l.b16 %v283
      %v302 = vunpack.c.l.b16 %v284
      %v303 = vunpack.c.l.b16 %v285
      %v304 = vunpack.c.l.b16 %v286
      %v305 = vunpack.c.l.b16 %v287
      %v306 = vunpack.c.l.b16 %v288
      %v307 = vunpack.c.l.b16 %v289
      %v308 = vpack.c.b16 %v301, %v300
      %v309 = vpack.c.b16 %v303, %v302
      %v310 = vpack.c.b16 %v305, %v304
      %v311 = vpack.c.b16 %v307, %v306
      %v314 = vunpack.c.l.b16 %v290
      %v315 = vunpack.c.l.b16 %v291
      %v316 = vpack.c.b16 %v315, %v314
      %vm318 = vcmask 130048
      %v320 = vsel %vm318, %v308, 0
      %v323 = vsel %vm318, %v309, 0
      %v326 = vsel %vm318, %v310, 0
      %v329 = vsel %vm318, %v311, 0
      %331 = vmatprep.subr.bf16.mxu0 0
      %332 = vmatpush1.bf16.msra.mxu0 0
      %333 = vmatprep.subr.bf16.mxu0 0
      %334 = vmatpush1.bf16.msra.mxu0 0
      %335 = vmatprep.subr.bf16.mxu0 0
      %336 = vmatpush1.bf16.msra.mxu0 0
      %337 = vmatprep.subr.bf16.mxu0 0
      %338 = vmatpush1.bf16.msra.mxu0 0
      %339 = vmatprep.subr.bf16.mxu0 0
      %340 = vmatpush1.bf16.msra.mxu0 0
      %341 = vmatprep.subr.bf16.mxu0 0
      %342 = vmatpush1.bf16.msra.mxu0 0
      %343 = vmatprep.subr.bf16.mxu0 0
      %344 = vmatpush1.bf16.msra.mxu0 0
      %345 = vmatprep.subr.bf16.mxu0 0
      %346 = vmatpush1.bf16.msra.mxu0 %v316
      %347 = vmatprep.subr.bf16.mxu0 0
      %348 = vmatpush2.bf16.msra.mxu0 0
      %349 = vmatprep.subr.bf16.mxu0 0
      %350 = vmatpush2.bf16.msra.mxu0 0
      %351 = vmatprep.subr.bf16.mxu0 0
      %352 = vmatpush2.bf16.msra.mxu0 0
      %353 = vmatprep.subr.bf16.mxu0 0
      %354 = vmatpush2.bf16.msra.mxu0 0
      %355 = vmatprep.subr.bf16.mxu0 0
      %356 = vmatpush2.bf16.msra.mxu0 0
      %357 = vmatprep.subr.bf16.mxu0 0
      %358 = vmatpush2.bf16.msra.mxu0 0
      %359 = vmatprep.subr.bf16.mxu0 0
      %360 = vmatpush2.bf16.msra.mxu0 0
      %361 = vmatprep.subr.bf16.mxu0 0
      %362 = vmatpush2.bf16.msra.mxu0 0
      %363 = vmatprep.mubr.bf16.mxu0 0
      %364 = vmatmul.mubr.bf16.gmra.mxu0 %v320
      %v365 = vpop.f32.mrf.mxu0
      %v366 = vadd.f32 0.0, %v365
      %v367 = vpop.f32.mrf.mxu0
      %v368 = vpop.f32.mrf.mxu0
      %v369 = vadd.f32 0.0, %v368
      %v370 = vpop.f32.mrf.mxu0
      %371 = vmatprep.mubr.bf16.mxu0 0
      %372 = vmatmul.mubr.bf16.gmra.mxu0 %v323
      %v373 = vpop.f32.mrf.mxu0
      %v374 = vadd.f32 0.0, %v373
      %v375 = vpop.f32.mrf.mxu0
      %v376 = vpop.f32.mrf.mxu0
      %v377 = vadd.f32 0.0, %v376
      %v378 = vpop.f32.mrf.mxu0
      %379 = vmatprep.mubr.bf16.mxu0 0
      %380 = vmatmul.mubr.bf16.gmra.mxu0 %v326
      %v381 = vpop.f32.mrf.mxu0
      %v382 = vadd.f32 0.0, %v381
      %v383 = vpop.f32.mrf.mxu0
      %v384 = vpop.f32.mrf.mxu0
      %v385 = vadd.f32 0.0, %v384
      %v386 = vpop.f32.mrf.mxu0
      %387 = vmatprep.mubr.bf16.mxu0 0
      %388 = vmatmul.mubr.bf16.gmra.mxu0 %v329
      %v389 = vpop.f32.mrf.mxu0
      %v390 = vadd.f32 0.0, %v389
      %v391 = vpop.f32.mrf.mxu0
      %v392 = vpop.f32.mrf.mxu0
      %v393 = vadd.f32 0.0, %v392
      %v394 = vpop.f32.mrf.mxu0
      %395 = vdwg.mxu0
      %v396 = vpack.c.bf16 %v369, %v366
      %v397 = vpack.c.bf16 %v377, %v374
      %v398 = vpack.c.bf16 %v385, %v382
      %v399 = vpack.c.bf16 %v393, %v390
      %v404 = vunpack.c.l.b16 %v396
      %v405 = vunpack.c.h.b16 %v396
      %v406 = vunpack.c.l.b16 %v397
      %v407 = vunpack.c.h.b16 %v397
      %v408 = vunpack.c.l.b16 %v398
      %v409 = vunpack.c.h.b16 %v398
      %v410 = vunpack.c.l.b16 %v399
      %v411 = vunpack.c.h.b16 %v399
      %v412 = vpack.c.b16 %v404, %v404
      %v413 = vpack.c.b16 %v405, %v405
      %v414 = vpack.c.b16 %v406, %v406
      %v415 = vpack.c.b16 %v407, %v407
      %v416 = vpack.c.b16 %v408, %v408
      %v417 = vpack.c.b16 %v409, %v409
      %v418 = vpack.c.b16 %v410, %v410
      %v419 = vpack.c.b16 %v411, %v411
      %vm428 = vcmask 519168
      %429 = vst.msk [vmem:[%s269] sm:$0xf] %vm428, %v412
      %430 = vst.msk [vmem:[%s269 + $0x4] sm:$0xf] %vm428, %v413
      %431 = vst.msk [vmem:[%s269 + $0x8] sm:$0xf] %vm428, %v414
      %432 = vst.msk [vmem:[%s269 + $0xc] sm:$0xf] %vm428, %v415
      %433 = vst.msk [vmem:[%s269 + $0x10] sm:$0xf] %vm428, %v416
      %434 = vst.msk [vmem:[%s269 + $0x14] sm:$0xf] %vm428, %v417
      %435 = vst.msk [vmem:[%s269 + $0x18] sm:$0xf] %vm428, %v418
      %436 = vst.msk [vmem:[%s269 + $0x1c] sm:$0xf] %vm428, %v419
      %v437 = vld [vmem:[%s274] sm:$0x1]
      %vm438 = vcmask 523264
      %v440 = vsel %vm438, 1.0, 0
      %442 = vmatprep.subr.mxu0 0.0
      %443 = vmatpush1.msra.mxu0 0.0
      %444 = vmatprep.subr.mxu0 0.0
      %445 = vmatpush1.msra.mxu0 0.0
      %446 = vmatprep.subr.mxu0 0.0
      %447 = vmatpush1.msra.mxu0 0.0
      %448 = vmatprep.subr.mxu0 0.0
      %449 = vmatpush1.msra.mxu0 0.0
      %450 = vmatprep.subr.mxu0 0.0
      %451 = vmatpush1.msra.mxu0 0.0
      %452 = vmatprep.subr.mxu0 0.0
      %453 = vmatpush1.msra.mxu0 0.0
      %454 = vmatprep.subr.mxu0 0.0
      %455 = vmatpush1.msra.mxu0 0.0
      %456 = vmatprep.subr.mxu0 0.0
      %457 = vmatpush1.msra.mxu0 0.0
      %458 = vmatprep.subr.mxu0 0.0
      %459 = vmatpush1.msra.mxu0 %v393
      %460 = vmatprep.subr.mxu0 0.0
      %461 = vmatpush1.msra.mxu0 %v390
      %462 = vmatprep.subr.mxu0 0.0
      %463 = vmatpush1.msra.mxu0 %v385
      %464 = vmatprep.subr.mxu0 0.0
      %465 = vmatpush1.msra.mxu0 %v382
      %466 = vmatprep.subr.mxu0 0.0
      %467 = vmatpush1.msra.mxu0 %v377
      %468 = vmatprep.subr.mxu0 0.0
      %469 = vmatpush1.msra.mxu0 %v374
      %470 = vmatprep.subr.mxu0 0.0
      %471 = vmatpush1.msra.mxu0 %v369
      %472 = vmatprep.subr.mxu0 0.0
      %473 = vmatpush1.msra.mxu0 %v366
      %474 = vmatprep.subr.mxu0 0.0
      %475 = vmatpush2.msra.mxu0 0.0
      %476 = vmatprep.subr.mxu0 0.0
      %477 = vmatpush2.msra.mxu0 0.0
      %478 = vmatprep.subr.mxu0 0.0
      %479 = vmatpush2.msra.mxu0 0.0
      %480 = vmatprep.subr.mxu0 0.0
      %481 = vmatpush2.msra.mxu0 0.0
      %482 = vmatprep.subr.mxu0 0.0
      %483 = vmatpush2.msra.mxu0 0.0
      %484 = vmatprep.subr.mxu0 0.0
      %485 = vmatpush2.msra.mxu0 0.0
      %486 = vmatprep.subr.mxu0 0.0
      %487 = vmatpush2.msra.mxu0 0.0
      %488 = vmatprep.subr.mxu0 0.0
      %489 = vmatpush2.msra.mxu0 0.0
      %490 = vmatprep.subr.mxu0 0.0
      %491 = vmatpush2.msra.mxu0 0.0
      %492 = vmatprep.subr.mxu0 0.0
      %493 = vmatpush2.msra.mxu0 0.0
      %494 = vmatprep.subr.mxu0 0.0
      %495 = vmatpush2.msra.mxu0 0.0
      %496 = vmatprep.subr.mxu0 0.0
      %497 = vmatpush2.msra.mxu0 0.0
      %498 = vmatprep.subr.mxu0 0.0
      %499 = vmatpush2.msra.mxu0 0.0
      %500 = vmatprep.subr.mxu0 0.0
      %501 = vmatpush2.msra.mxu0 0.0
      %502 = vmatprep.subr.mxu0 0.0
      %503 = vmatpush2.msra.mxu0 0.0
      %504 = vmatprep.subr.mxu0 0.0
      %505 = vmatpush2.msra.mxu0 0.0
      %506 = vmatprep.mubr.f32.mxu0 0.0
      %507 = vmatmul.mubr.f32.gmra.mxu0 %v440
      %v508 = vpop.f32.mrf.mxu0
      %v509 = vadd.f32 0.0, %v508
      %v510 = vpop.f32.mrf.mxu0
      %511 = vdwg.mxu0
      %v512 = vadd.f32 %v437, %v509
      %vm513 = vcmask 516096
      %514 = vst.msk [vmem:[%s274] sm:$0x1] %vm513, %v512
      %v515 = vld [vmem:[%s274 + $0x1] sm:$0x1]
      %v516 = vmul.f32 %v366, %v366
      %v517 = vmul.f32 %v369, %v369
      %v518 = vmul.f32 %v374, %v374
      %v519 = vmul.f32 %v377, %v377
      %v520 = vmul.f32 %v382, %v382
      %v521 = vmul.f32 %v385, %v385
      %v522 = vmul.f32 %v390, %v390
      %v523 = vmul.f32 %v393, %v393
      %524 = vmatprep.subr.mxu0 0.0
      %525 = vmatpush1.msra.mxu0 0.0
      %526 = vmatprep.subr.mxu0 0.0
      %527 = vmatpush1.msra.mxu0 0.0
      %528 = vmatprep.subr.mxu0 0.0
      %529 = vmatpush1.msra.mxu0 0.0
      %530 = vmatprep.subr.mxu0 0.0
      %531 = vmatpush1.msra.mxu0 0.0
      %532 = vmatprep.subr.mxu0 0.0
      %533 = vmatpush1.msra.mxu0 0.0
      %534 = vmatprep.subr.mxu0 0.0
      %535 = vmatpush1.msra.mxu0 0.0
      %536 = vmatprep.subr.mxu0 0.0
      %537 = vmatpush1.msra.mxu0 0.0
      %538 = vmatprep.subr.mxu0 0.0
      %539 = vmatpush1.msra.mxu0 0.0
      %540 = vmatprep.subr.mxu0 0.0
      %541 = vmatpush1.msra.mxu0 %v523
      %542 = vmatprep.subr.mxu0 0.0
      %543 = vmatpush1.msra.mxu0 %v522
      %544 = vmatprep.subr.mxu0 0.0
      %545 = vmatpush1.msra.mxu0 %v521
      %546 = vmatprep.subr.mxu0 0.0
      %547 = vmatpush1.msra.mxu0 %v520
      %548 = vmatprep.subr.mxu0 0.0
      %549 = vmatpush1.msra.mxu0 %v519
      %550 = vmatprep.subr.mxu0 0.0
      %551 = vmatpush1.msra.mxu0 %v518
      %552 = vmatprep.subr.mxu0 0.0
      %553 = vmatpush1.msra.mxu0 %v517
      %554 = vmatprep.subr.mxu0 0.0
      %555 = vmatpush1.msra.mxu0 %v516
      %556 = vmatprep.subr.mxu0 0.0
      %557 = vmatpush2.msra.mxu0 0.0
      %558 = vmatprep.subr.mxu0 0.0
      %559 = vmatpush2.msra.mxu0 0.0
      %560 = vmatprep.subr.mxu0 0.0
      %561 = vmatpush2.msra.mxu0 0.0
      %562 = vmatprep.subr.mxu0 0.0
      %563 = vmatpush2.msra.mxu0 0.0
      %564 = vmatprep.subr.mxu0 0.0
      %565 = vmatpush2.msra.mxu0 0.0
      %566 = vmatprep.subr.mxu0 0.0
      %567 = vmatpush2.msra.mxu0 0.0
      %568 = vmatprep.subr.mxu0 0.0
      %569 = vmatpush2.msra.mxu0 0.0
      %570 = vmatprep.subr.mxu0 0.0
      %571 = vmatpush2.msra.mxu0 0.0
      %572 = vmatprep.subr.mxu0 0.0
      %573 = vmatpush2.msra.mxu0 0.0
      %574 = vmatprep.subr.mxu0 0.0
      %575 = vmatpush2.msra.mxu0 0.0
      %576 = vmatprep.subr.mxu0 0.0
      %577 = vmatpush2.msra.mxu0 0.0
      %578 = vmatprep.subr.mxu0 0.0
      %579 = vmatpush2.msra.mxu0 0.0
      %580 = vmatprep.subr.mxu0 0.0
      %581 = vmatpush2.msra.mxu0 0.0
      %582 = vmatprep.subr.mxu0 0.0
      %583 = vmatpush2.msra.mxu0 0.0
      %584 = vmatprep.subr.mxu0 0.0
      %585 = vmatpush2.msra.mxu0 0.0
      %586 = vmatprep.subr.mxu0 0.0
      %587 = vmatpush2.msra.mxu0 0.0
      %588 = vmatprep.mubr.f32.mxu0 0.0
      %589 = vmatmul.mubr.f32.gmra.mxu0 %v440
      %v590 = vpop.f32.mrf.mxu0
      %v591 = vadd.f32 0.0, %v590
      %v592 = vpop.f32.mrf.mxu0
      %593 = vdwg.mxu0
      %v594 = vadd.f32 %v515, %v591
      %595 = vst.msk [vmem:[%s274 + $0x1] sm:$0x1] %vm513, %v594
      %p596 = scmp.eq.s32.totalorder %s22, 3
      // Predicated region
      $region41: #{fuse_block_forward.2} parent=35 // pred_check
        %p597 = pneg %p596
      $region42: #{fuse_block_forward.2} parent=35 // pred_check_branch
        %599 = sbr.rel (%p597) target = $region44
      $region43: #{fuse_block_forward.2} parent=35 // pred_region
        %v600 = vld [vmem:[%s274] sm:$0x1]
        %v601 = vld [vmem:[%s274 + $0x1] sm:$0x1]
        %v602 = vld [vmem:[%s2] sm:$0xff]
        %v603 = vld [vmem:[%s2 + $0x8] sm:$0xff]
        %v604 = vld [vmem:[%s2 + $0x10] sm:$0xff]
        %v605 = vld [vmem:[%s2 + $0x18] sm:$0xff]
        %v606 = vld [vmem:[%s2 + $0x20] sm:$0xff]
        %v607 = vld [vmem:[%s2 + $0x28] sm:$0xff]
        %v608 = vld [vmem:[%s2 + $0x30] sm:$0xff]
        %v609 = vld [vmem:[%s2 + $0x38] sm:$0xff]
        %v610 = vld [vmem:[%s3] sm:$0xff]
        %v611 = vld [vmem:[%s3 + $0x8] sm:$0xff]
        %v612 = vld [vmem:[%s3 + $0x10] sm:$0xff]
        %v613 = vld [vmem:[%s3 + $0x18] sm:$0xff]
        %v615 = vsel %vm438, %v600, 0
        %617 = vmatprep.subr.mxu0 0.0
        %618 = vmatpush1.msra.mxu0 0.0
        %619 = vmatprep.subr.mxu0 0.0
        %620 = vmatpush1.msra.mxu0 0.0
        %621 = vmatprep.subr.mxu0 0.0
        %622 = vmatpush1.msra.mxu0 0.0
        %623 = vmatprep.subr.mxu0 0.0
        %624 = vmatpush1.msra.mxu0 0.0
        %625 = vmatprep.subr.mxu0 0.0
        %626 = vmatpush1.msra.mxu0 0.0
        %627 = vmatprep.subr.mxu0 0.0
        %628 = vmatpush1.msra.mxu0 0.0
        %629 = vmatprep.subr.mxu0 0.0
        %630 = vmatpush1.msra.mxu0 0.0
        %631 = vmatprep.subr.mxu0 0.0
        %632 = vmatpush1.msra.mxu0 0.0
        %633 = vmatprep.subr.mxu0 0.0
        %634 = vmatpush1.msra.mxu0 %v609
        %635 = vmatprep.subr.mxu0 0.0
        %636 = vmatpush1.msra.mxu0 %v608
        %637 = vmatprep.subr.mxu0 0.0
        %638 = vmatpush1.msra.mxu0 %v607
        %639 = vmatprep.subr.mxu0 0.0
        %640 = vmatpush1.msra.mxu0 %v606
        %641 = vmatprep.subr.mxu0 0.0
        %642 = vmatpush1.msra.mxu0 %v605
        %643 = vmatprep.subr.mxu0 0.0
        %644 = vmatpush1.msra.mxu0 %v604
        %645 = vmatprep.subr.mxu0 0.0
        %646 = vmatpush1.msra.mxu0 %v603
        %647 = vmatprep.subr.mxu0 0.0
        %648 = vmatpush1.msra.mxu0 %v602
        %649 = vmatprep.subr.mxu0 0.0
        %650 = vmatpush2.msra.mxu0 0.0
        %651 = vmatprep.subr.mxu0 0.0
        %652 = vmatpush2.msra.mxu0 0.0
        %653 = vmatprep.subr.mxu0 0.0
        %654 = vmatpush2.msra.mxu0 0.0
        %655 = vmatprep.subr.mxu0 0.0
        %656 = vmatpush2.msra.mxu0 0.0
        %657 = vmatprep.subr.mxu0 0.0
        %658 = vmatpush2.msra.mxu0 0.0
        %659 = vmatprep.subr.mxu0 0.0
        %660 = vmatpush2.msra.mxu0 0.0
        %661 = vmatprep.subr.mxu0 0.0
        %662 = vmatpush2.msra.mxu0 0.0
        %663 = vmatprep.subr.mxu0 0.0
        %664 = vmatpush2.msra.mxu0 0.0
        %665 = vmatprep.subr.mxu0 0.0
        %666 = vmatpush2.msra.mxu0 0.0
        %667 = vmatprep.subr.mxu0 0.0
        %668 = vmatpush2.msra.mxu0 0.0
        %669 = vmatprep.subr.mxu0 0.0
        %670 = vmatpush2.msra.mxu0 0.0
        %671 = vmatprep.subr.mxu0 0.0
        %672 = vmatpush2.msra.mxu0 0.0
        %673 = vmatprep.subr.mxu0 0.0
        %674 = vmatpush2.msra.mxu0 0.0
        %675 = vmatprep.subr.mxu0 0.0
        %676 = vmatpush2.msra.mxu0 0.0
        %677 = vmatprep.subr.mxu0 0.0
        %678 = vmatpush2.msra.mxu0 0.0
        %679 = vmatprep.subr.mxu0 0.0
        %680 = vmatpush2.msra.mxu0 0.0
        %681 = vmatprep.mubr.f32.mxu0 0.0
        %682 = vmatmul.mubr.f32.gmra.mxu0 %v615
        %v683 = vpop.f32.mrf.mxu0
        %v684 = vadd.f32 0.0, %v683
        %v685 = vpop.f32.mrf.mxu0
        %686 = vdwg.mxu0
        %v688 = vsel %vm438, %v601, 0
        %690 = vmatprep.subr.mxu0 0.0
        %691 = vmatpush1.msra.mxu0 0.0
        %692 = vmatprep.subr.mxu0 0.0
        %693 = vmatpush1.msra.mxu0 0.0
        %694 = vmatprep.subr.mxu0 0.0
        %695 = vmatpush1.msra.mxu0 0.0
        %696 = vmatprep.subr.mxu0 0.0
        %697 = vmatpush1.msra.mxu0 0.0
        %698 = vmatprep.subr.mxu0 0.0
        %699 = vmatpush1.msra.mxu0 0.0
        %700 = vmatprep.subr.mxu0 0.0
        %701 = vmatpush1.msra.mxu0 0.0
        %702 = vmatprep.subr.mxu0 0.0
        %703 = vmatpush1.msra.mxu0 0.0
        %704 = vmatprep.subr.mxu0 0.0
        %705 = vmatpush1.msra.mxu0 0.0
        %706 = vmatprep.subr.mxu0 0.0
        %707 = vmatpush1.msra.mxu0 %v609
        %708 = vmatprep.subr.mxu0 0.0
        %709 = vmatpush1.msra.mxu0 %v608
        %710 = vmatprep.subr.mxu0 0.0
        %711 = vmatpush1.msra.mxu0 %v607
        %712 = vmatprep.subr.mxu0 0.0
        %713 = vmatpush1.msra.mxu0 %v606
        %714 = vmatprep.subr.mxu0 0.0
        %715 = vmatpush1.msra.mxu0 %v605
        %716 = vmatprep.subr.mxu0 0.0
        %717 = vmatpush1.msra.mxu0 %v604
        %718 = vmatprep.subr.mxu0 0.0
        %719 = vmatpush1.msra.mxu0 %v603
        %720 = vmatprep.subr.mxu0 0.0
        %721 = vmatpush1.msra.mxu0 %v602
        %722 = vmatprep.subr.mxu0 0.0
        %723 = vmatpush2.msra.mxu0 0.0
        %724 = vmatprep.subr.mxu0 0.0
        %725 = vmatpush2.msra.mxu0 0.0
        %726 = vmatprep.subr.mxu0 0.0
        %727 = vmatpush2.msra.mxu0 0.0
        %728 = vmatprep.subr.mxu0 0.0
        %729 = vmatpush2.msra.mxu0 0.0
        %730 = vmatprep.subr.mxu0 0.0
        %731 = vmatpush2.msra.mxu0 0.0
        %732 = vmatprep.subr.mxu0 0.0
        %733 = vmatpush2.msra.mxu0 0.0
        %734 = vmatprep.subr.mxu0 0.0
        %735 = vmatpush2.msra.mxu0 0.0
        %736 = vmatprep.subr.mxu0 0.0
        %737 = vmatpush2.msra.mxu0 0.0
        %738 = vmatprep.subr.mxu0 0.0
        %739 = vmatpush2.msra.mxu0 0.0
        %740 = vmatprep.subr.mxu0 0.0
        %741 = vmatpush2.msra.mxu0 0.0
        %742 = vmatprep.subr.mxu0 0.0
        %743 = vmatpush2.msra.mxu0 0.0
        %744 = vmatprep.subr.mxu0 0.0
        %745 = vmatpush2.msra.mxu0 0.0
        %746 = vmatprep.subr.mxu0 0.0
        %747 = vmatpush2.msra.mxu0 0.0
        %748 = vmatprep.subr.mxu0 0.0
        %749 = vmatpush2.msra.mxu0 0.0
        %750 = vmatprep.subr.mxu0 0.0
        %751 = vmatpush2.msra.mxu0 0.0
        %752 = vmatprep.subr.mxu0 0.0
        %753 = vmatpush2.msra.mxu0 0.0
        %754 = vmatprep.mubr.f32.mxu0 0.0
        %755 = vmatmul.mubr.f32.gmra.mxu0 %v688
        %v756 = vpop.f32.mrf.mxu0
        %v757 = vadd.f32 0.0, %v756
        %v758 = vpop.f32.mrf.mxu0
        %759 = vdwg.mxu0
        %v760 = vrcp.pop 512.0
        %v761 = vmul.f32 %v684, %v760
        %v762 = vmul.f32 %v757, %v760
        %v763 = vmul.f32 %v761, %v761
        %v764 = vsub.f32 %v762, %v763
        %v765 = vmax.f32 %v764, 0.0
        %v766 = vadd.f32 %v765, 1e-05
        %v767 = vrsqrt.pop %v766
        %vm768 = vcmask 261120
        %v770 = vsel %vm768, %v761, 0
        %772 = vmatprep.subr.mxu0 0.0
        %773 = vmatpush1.msra.mxu0 0.0
        %774 = vmatprep.subr.mxu0 0.0
        %775 = vmatpush1.msra.mxu0 0.0
        %776 = vmatprep.subr.mxu0 0.0
        %777 = vmatpush1.msra.mxu0 0.0
        %778 = vmatprep.subr.mxu0 0.0
        %779 = vmatpush1.msra.mxu0 0.0
        %780 = vmatprep.subr.mxu0 0.0
        %781 = vmatpush1.msra.mxu0 0.0
        %782 = vmatprep.subr.mxu0 0.0
        %783 = vmatpush1.msra.mxu0 0.0
        %784 = vmatprep.subr.mxu0 0.0
        %785 = vmatpush1.msra.mxu0 0.0
        %786 = vmatprep.subr.mxu0 0.0
        %787 = vmatpush1.msra.mxu0 0.0
        %788 = vmatprep.subr.mxu0 0.0
        %789 = vmatpush1.msra.mxu0 0.0
        %790 = vmatprep.subr.mxu0 0.0
        %791 = vmatpush1.msra.mxu0 0.0
        %792 = vmatprep.subr.mxu0 0.0
        %793 = vmatpush1.msra.mxu0 0.0
        %794 = vmatprep.subr.mxu0 0.0
        %795 = vmatpush1.msra.mxu0 0.0
        %796 = vmatprep.subr.mxu0 0.0
        %797 = vmatpush1.msra.mxu0 %v613
        %798 = vmatprep.subr.mxu0 0.0
        %799 = vmatpush1.msra.mxu0 %v612
        %800 = vmatprep.subr.mxu0 0.0
        %801 = vmatpush1.msra.mxu0 %v611
        %802 = vmatprep.subr.mxu0 0.0
        %803 = vmatpush1.msra.mxu0 %v610
        %804 = vmatprep.subr.mxu0 0.0
        %805 = vmatpush2.msra.mxu0 0.0
        %806 = vmatprep.subr.mxu0 0.0
        %807 = vmatpush2.msra.mxu0 0.0
        %808 = vmatprep.subr.mxu0 0.0
        %809 = vmatpush2.msra.mxu0 0.0
        %810 = vmatprep.subr.mxu0 0.0
        %811 = vmatpush2.msra.mxu0 0.0
        %812 = vmatprep.subr.mxu0 0.0
        %813 = vmatpush2.msra.mxu0 0.0
        %814 = vmatprep.subr.mxu0 0.0
        %815 = vmatpush2.msra.mxu0 0.0
        %816 = vmatprep.subr.mxu0 0.0
        %817 = vmatpush2.msra.mxu0 0.0
        %818 = vmatprep.subr.mxu0 0.0
        %819 = vmatpush2.msra.mxu0 0.0
        %820 = vmatprep.subr.mxu0 0.0
        %821 = vmatpush2.msra.mxu0 0.0
        %822 = vmatprep.subr.mxu0 0.0
        %823 = vmatpush2.msra.mxu0 0.0
        %824 = vmatprep.subr.mxu0 0.0
        %825 = vmatpush2.msra.mxu0 0.0
        %826 = vmatprep.subr.mxu0 0.0
        %827 = vmatpush2.msra.mxu0 0.0
        %828 = vmatprep.subr.mxu0 0.0
        %829 = vmatpush2.msra.mxu0 0.0
        %830 = vmatprep.subr.mxu0 0.0
        %831 = vmatpush2.msra.mxu0 0.0
        %832 = vmatprep.subr.mxu0 0.0
        %833 = vmatpush2.msra.mxu0 0.0
        %834 = vmatprep.subr.mxu0 0.0
        %835 = vmatpush2.msra.mxu0 0.0
        %836 = vmatprep.mubr.f32.mxu0 0.0
        %837 = vmatmul.mubr.f32.gmra.mxu0 %v770
        %v838 = vpop.f32.mrf.mxu0
        %v839 = vadd.f32 0.0, %v838
        %v840 = vpop.f32.mrf.mxu0
        %841 = vdwg.mxu0
        %v843 = vsel %vm768, %v767, 0
        %845 = vmatprep.subr.mxu0 0.0
        %846 = vmatpush1.msra.mxu0 0.0
        %847 = vmatprep.subr.mxu0 0.0
        %848 = vmatpush1.msra.mxu0 0.0
        %849 = vmatprep.subr.mxu0 0.0
        %850 = vmatpush1.msra.mxu0 0.0
        %851 = vmatprep.subr.mxu0 0.0
        %852 = vmatpush1.msra.mxu0 0.0
        %853 = vmatprep.subr.mxu0 0.0
        %854 = vmatpush1.msra.mxu0 0.0
        %855 = vmatprep.subr.mxu0 0.0
        %856 = vmatpush1.msra.mxu0 0.0
        %857 = vmatprep.subr.mxu0 0.0
        %858 = vmatpush1.msra.mxu0 0.0
        %859 = vmatprep.subr.mxu0 0.0
        %860 = vmatpush1.msra.mxu0 0.0
        %861 = vmatprep.subr.mxu0 0.0
        %862 = vmatpush1.msra.mxu0 0.0
        %863 = vmatprep.subr.mxu0 0.0
        %864 = vmatpush1.msra.mxu0 0.0
        %865 = vmatprep.subr.mxu0 0.0
        %866 = vmatpush1.msra.mxu0 0.0
        %867 = vmatprep.subr.mxu0 0.0
        %868 = vmatpush1.msra.mxu0 0.0
        %869 = vmatprep.subr.mxu0 0.0
        %870 = vmatpush1.msra.mxu0 %v613
        %871 = vmatprep.subr.mxu0 0.0
        %872 = vmatpush1.msra.mxu0 %v612
        %873 = vmatprep.subr.mxu0 0.0
        %874 = vmatpush1.msra.mxu0 %v611
        %875 = vmatprep.subr.mxu0 0.0
        %876 = vmatpush1.msra.mxu0 %v610
        %877 = vmatprep.subr.mxu0 0.0
        %878 = vmatpush2.msra.mxu0 0.0
        %879 = vmatprep.subr.mxu0 0.0
        %880 = vmatpush2.msra.mxu0 0.0
        %881 = vmatprep.subr.mxu0 0.0
        %882 = vmatpush2.msra.mxu0 0.0
        %883 = vmatprep.subr.mxu0 0.0
        %884 = vmatpush2.msra.mxu0 0.0
        %885 = vmatprep.subr.mxu0 0.0
        %886 = vmatpush2.msra.mxu0 0.0
        %887 = vmatprep.subr.mxu0 0.0
        %888 = vmatpush2.msra.mxu0 0.0
        %889 = vmatprep.subr.mxu0 0.0
        %890 = vmatpush2.msra.mxu0 0.0
        %891 = vmatprep.subr.mxu0 0.0
        %892 = vmatpush2.msra.mxu0 0.0
        %893 = vmatprep.subr.mxu0 0.0
        %894 = vmatpush2.msra.mxu0 0.0
        %895 = vmatprep.subr.mxu0 0.0
        %896 = vmatpush2.msra.mxu0 0.0
        %897 = vmatprep.subr.mxu0 0.0
        %898 = vmatpush2.msra.mxu0 0.0
        %899 = vmatprep.subr.mxu0 0.0
        %900 = vmatpush2.msra.mxu0 0.0
        %901 = vmatprep.subr.mxu0 0.0
        %902 = vmatpush2.msra.mxu0 0.0
        %903 = vmatprep.subr.mxu0 0.0
        %904 = vmatpush2.msra.mxu0 0.0
        %905 = vmatprep.subr.mxu0 0.0
        %906 = vmatpush2.msra.mxu0 0.0
        %907 = vmatprep.subr.mxu0 0.0
        %908 = vmatpush2.msra.mxu0 0.0
        %909 = vmatprep.mubr.f32.mxu0 0.0
        %910 = vmatmul.mubr.f32.gmra.mxu0 %v843
        %v911 = vpop.f32.mrf.mxu0
        %v912 = vadd.f32 0.0, %v911
        %v913 = vpop.f32.mrf.mxu0
        %914 = vdwg.mxu0
        %915 = vst.msk [vmem:[%s274] sm:$0x1] %vm513, %v839
        %916 = vst.msk [vmem:[%s274 + $0x1] sm:$0x1] %vm513, %v912
      $region44: #{fuse_block_forward.2} parent=35 // pred_fallthru
        _
      %s917 = smul.u32 8, %s22
      %p918 = scmp.lt.s32.totalorder %s21, 1
      %s919 = scalar_select %p918, %s21, 1
      %p920 = scmp.lt.s32.totalorder %s917, 31
      %s921 = scalar_select %p920, %s917, 31
      %s922 = smul.addr %s919, 32
      %s923 = sadd.s32 %s921, %s922
      %s924 = smul.addr %s923, 4
      %s925 = scalar_lea.vmem %s4, %s924
      %p926 = scmp.lt.s32.totalorder %s21, 1
      %s927 = scalar_select %p926, %s21, 1
      %s928 = smul.addr %s927, 8
      %s929 = scalar_lea.vmem %s5, %s928
      // Predicated region
      $region45: #{fuse_block_forward.2} parent=35 // pred_check
        %p930 = pneg %p140
      $region46: #{fuse_block_forward.2} parent=35 // pred_check_branch
        %932 = sbr.rel (%p930) target = $region48
      $region47: #{fuse_block_forward.2} parent=35 // pred_region
        %s933 = smul.u32 8, %s22
      $region48: #{fuse_block_forward.2} parent=35 // pred_fallthru
        _
      // Predicated region
      $region49: #{fuse_block_forward.2} parent=35 // pred_check
        %p934 = pneg %p166
      $region50: #{fuse_block_forward.2} parent=35 // pred_check_branch
        %936 = sbr.rel (%p934) target = $region52
      $region51: #{fuse_block_forward.2} parent=35 // pred_region
        _
      $region52: #{fuse_block_forward.2} parent=35 // pred_fallthru
        _
    $region36: #{fuse_block_forward.2} parent=5 // pred_fallthru
      _
    %p937 = scmp.le.s32.totalorder 2, %s12
    // Predicated region
    $region53: #{fuse_block_forward.2} parent=5 // pred_check
      %p938 = pneg %p937
    $region54: #{fuse_block_forward.2} parent=5 // pred_check_branch
      %940 = sbr.rel (%p938) target = $region56
    $region55: #{fuse_block_forward.2} parent=5 // pred_region
      %s941 = ssub.s32 %s12, 2
      // Predicated region
      $region57: #{fuse_block_forward.2} parent=55 // pred_check
        %p942 = pneg %p146
      $region58: #{fuse_block_forward.2} parent=55 // pred_check_branch
        %944 = sbr.rel (%p942) target = $region60
      $region59: #{fuse_block_forward.2} parent=55 // pred_region
        %s945 = smul.u32 8, %s24
        %p946 = scmp.lt.s32.totalorder %s23, 1
        %s947 = scalar_select %p946, %s23, 1
        %p948 = scmp.lt.s32.totalorder %s945, 31
        %s949 = scalar_select %p948, %s945, 31
        %s950 = smul.addr %s947, 32
        %s951 = sadd.s32 %s949, %s950
        %s952 = smul.addr %s951, 4
        %s953 = scalar_lea.vmem %s4, %s952
      $region60: #{fuse_block_forward.2} parent=55 // pred_fallthru
        _
      // Predicated region
      $region61: #{fuse_block_forward.2} parent=55 // pred_check
        %p954 = pneg %p172
      $region62: #{fuse_block_forward.2} parent=55 // pred_check_branch
        %956 = sbr.rel (%p954) target = $region64
      $region63: #{fuse_block_forward.2} parent=55 // pred_region
        %p957 = scmp.lt.s32.totalorder %s23, 1
        %s958 = scalar_select %p957, %s23, 1
        %s959 = smul.addr %s958, 8
        %s960 = scalar_lea.vmem %s5, %s959
      $region64: #{fuse_block_forward.2} parent=55 // pred_fallthru
        _
    $region56: #{fuse_block_forward.2} parent=5 // pred_fallthru
      _
  $region6: #{fuse_block_forward.2} parent=0 // loop_footer
    %s16 = sadd.s32 1, %s12
  $region7: #{fuse_block_forward.2} parent=0 // loop_footer_branch
    %11 = sbr.rel target = $region3
  $region8: #{fuse_block_forward.2} parent=0 // loop_exit
    _

</llo_original>
